<compile_context>
chip_gen: v7x
topology: tpu7x:2x2x1
jax: 0.10.0
libtpu: 0.0.40
codegen_flags: <defaults>
</compile_context>

<pallas_src>
import jax
import jax.numpy as jnp
import numpy as np
from jax.experimental import pallas as pl
from jax.experimental.pallas import tpu as pltpu

_LANE = 128


# ---------------------------------------------------------------------------
# Pallas kernel: one (edge_split, edge_tile) grid step
# ---------------------------------------------------------------------------
def kuramoto_edge_kernel(rc_ref, colt_ref, ea_ref, pre_ref, w1e_ref, b1_ref,
                         w2_ref, b2_ref, out_ref, acc_ref):
    f32, bf16 = jnp.float32, jnp.bfloat16
    k = pl.program_id(1)

    @pl.when(k == 0)
    def _():
        acc_ref[...] = jnp.zeros_like(acc_ref)

    te = rc_ref.shape[0]
    bn = acc_ref.shape[0]

    rc = rc_ref[...]                     # (te, 2) int32: [row | col]
    row = rc[:, 0:1]
    col = rc[:, 1:2]

    # --- fused source+dest gather as ONE bf16 one-hot matmul -----------------
    # pre_ref = [pre_s ; pre_d] (2*BN, H): column row[e] selects pre_s[row[e]],
    # column BN + col[e] selects pre_d[col[e]].  Padded edges carry
    # out-of-range sentinels (row=2*BN, col=BN) -> all-zero one-hot rows.
    ids = jax.lax.broadcasted_iota(jnp.int32, (te, 2 * bn), 1)
    gather = jnp.logical_or(ids == row, ids == col + bn).astype(bf16)
    h = (jnp.dot(gather, pre_ref[...], preferred_element_type=f32)
         + jnp.dot(ea_ref[...], w1e_ref[...], preferred_element_type=f32)
         + b1_ref[...])
    h = jnp.maximum(h, 0.0)
    edge_prime = (jnp.dot(h, w2_ref[...], preferred_element_type=f32)
                  + b2_ref[...]).astype(bf16)             # (te, EE)

    # --- scatter_sum(edge_prime, col): pre-transposed one-hot, plain NN dot --
    # Sentinel col == BN matches no node row, so padded edges contribute zero.
    ids_t = jax.lax.broadcasted_iota(jnp.int32, (bn, te), 0)
    scat = (ids_t == colt_ref[...]).astype(bf16)          # (BN, te)
    acc_ref[...] += jnp.dot(scat, edge_prime, preferred_element_type=f32)

    @pl.when(k == pl.num_programs(1) - 1)
    def _():
        out_ref[...] = acc_ref[...]


# ---------------------------------------------------------------------------
# Wrapper: encoder folds, pre-projections, tiling, VMEM budget, epilogue
# ---------------------------------------------------------------------------
def _round_up(n, m):
    return -(-n // m) * m


def _vmem_capacity_bytes():
    try:
        cap = getattr(pltpu.get_tpu_info(), "vmem_capacity_bytes", None)
        if cap:
            return int(cap)
    except Exception:
        pass
    return 64 * 1024 * 1024   # conservative fallback (v7x per-core VMEM)


def kuramoto_forward(params, x, edge_index, batch, node_attr, edge_attr,
                     glob_attr, *, edge_tile=2048, n_edge_splits=2):
    del glob_attr                       # glob embedding is unused by forward
    f32, bf16 = jnp.float32, jnp.bfloat16
    BN = x.shape[0]
    BE = edge_index.shape[1]
    assert BN == batch.shape[0]
    n_edge_splits = max(1, int(n_edge_splits))

    # ---- node-dense pre-projections as plain XLA (full-rate dense matmuls) --
    node_in = jnp.concatenate([jnp.sin(x), jnp.cos(x), node_attr],
                              axis=-1).astype(f32)
    node_emb = node_in @ params["wne"] + params["bne"]                # (BN, NE)
    pre_s = node_emb @ params["w1s"]                                  # (BN, H)
    pre_d = node_emb @ params["w1d"]                                  # (BN, H)
    pre_sd = jnp.concatenate([pre_s, pre_d], axis=0).astype(bf16)     # (2BN, H)

    # ---- algebraic parameter folds (exact) ----------------------------------
    w1ef = (params["wee"] @ params["w1e"]).astype(bf16)               # (EAD, H)
    b1f = (params["bee"] @ params["w1e"] + params["b1"]).astype(f32)  # (1, H)
    w2 = params["w2"].astype(f32)                                     # (H, EE)
    b2 = params["b2"].astype(f32)                                     # (1, EE)
    wd2 = (params["v2"] @ params["wd"]).astype(f32)                   # (H2, SD)
    bd2 = (params["c2"] @ params["wd"] + params["bd"]).astype(f32)    # (1, SD)

    H = pre_sd.shape[1]
    EAD = w1ef.shape[0]
    EE = w2.shape[1]

    # ---- generation-aware VMEM budget & edge-tile sizing ---------------------
    vmem_cap = int(_vmem_capacity_bytes() * 0.85)   # 64 MiB v7x vs 128 MiB v5e/v6e
    resident_b = (2 * BN * _round_up(H, _LANE) * 2          # [pre_s; pre_d] bf16
                  + EAD * _round_up(H, _LANE) * 2           # folded edge weights
                  + BN * _round_up(EE, _LANE) * 4           # accumulator scratch
                  + 2 * BN * _round_up(EE, _LANE) * 4       # double-buffered out
                  + 8 * 8 * _LANE * 4)                      # biases / w2 / slack
    per_edge_b = (2 * BN * (4 + 2)                  # (te, 2BN) iota + one-hot
                  + BN * (4 + 2)                    # (BN, te) iota + scatter one-hot
                  + _round_up(H, _LANE) * 4         # h (f32)
                  + _round_up(EE, _LANE) * (4 + 2)  # edge_prime f32 + bf16
                  + 2 * (2 * 4 + 4 + _round_up(EAD, _LANE) * 2))  # streams, x2 buf
    te_budget = max(_LANE, ((vmem_cap - resident_b) // max(per_edge_b, 1))
                    // _LANE * _LANE)

    per_split = -(-BE // n_edge_splits)
    te = min(int(edge_tile), te_budget, _round_up(per_split, _LANE))
    te = max(_LANE, (te // _LANE) * _LANE)           # lane/sublane aligned tile
    K = -(-per_split // te)                          # edge tiles per split
    BE_pad = n_edge_splits * K * te
    pad = BE_pad - BE

    vmem_limit = int(min(vmem_cap,
                         max(32 * 1024 * 1024,
                             2 * (resident_b + te * per_edge_b))))

    # ---- edge streams: packed [row|col], lane-major col copy, bf16 attrs -----
    # NOTE: indices outside [0, BN) are silently dropped by the one-hot builds;
    # real inputs are assumed sanitized (PyTorch scatter would error instead).
    row_p = jnp.pad(edge_index[0].astype(jnp.int32), (0, pad),
                    constant_values=2 * BN)          # matches nothing
    col_p = jnp.pad(edge_index[1].astype(jnp.int32), (0, pad),
                    constant_values=BN)              # matches nothing
    rc = jnp.stack([row_p, col_p], axis=1)           # (BE_pad, 2)
    col_t = col_p.reshape(1, BE_pad)                 # (1, BE_pad)
    ea = jnp.pad(edge_attr.astype(f32), ((0, pad), (0, 0))).astype(bf16)

    grid_spec = pltpu.PrefetchScalarGridSpec(
        num_scalar_prefetch=0,
        grid=(n_edge_splits, K),
        in_specs=[
            pl.BlockSpec((te, 2), lambda i, k: (i * K + k, 0)),     # rc tile
            pl.BlockSpec((1, te), lambda i, k: (0, i * K + k)),     # col (lane-major)
            pl.BlockSpec((te, EAD), lambda i, k: (i * K + k, 0)),   # edge_attr tile
            pl.BlockSpec((2 * BN, H), lambda i, k: (0, 0)),         # [pre_s; pre_d]
            pl.BlockSpec((EAD, H), lambda i, k: (0, 0)),            # folded w1e
            pl.BlockSpec((1, H), lambda i, k: (0, 0)),              # folded b1
            pl.BlockSpec((H, EE), lambda i, k: (0, 0)),             # w2
            pl.BlockSpec((1, EE), lambda i, k: (0, 0)),             # b2
        ],
        out_specs=pl.BlockSpec((None, BN, EE), lambda i, k: (i, 0, 0)),
        scratch_shapes=[pltpu.VMEM((BN, EE), f32)],
    )

    edge_bar_parts = pl.pallas_call(
        kuramoto_edge_kernel,
        out_shape=jax.ShapeDtypeStruct((n_edge_splits, BN, EE), f32),
        grid_spec=grid_spec,
        compiler_params=pltpu.CompilerParams(
            # edge-split axis feeds v7x's two TensorCores; the inner edge-tile
            # axis is a scatter-sum reduction.
            dimension_semantics=("parallel", "arbitrary"),
            vmem_limit_bytes=vmem_limit,
        ),
    )(rc, col_t, ea, pre_sd, w1ef, b1f, w2, b2)

    # ---- phi_v + decoder epilogue (tiny node-dense matmuls; plain XLA) ------
    edge_bar = jnp.sum(edge_bar_parts, axis=0)                        # (BN, EE)
    h2 = jnp.maximum(edge_bar @ params["v1"] + params["c1"], 0.0)
    return h2 @ wd2 + bd2


# ---------------------------------------------------------------------------
# Deterministic parameter construction
# ---------------------------------------------------------------------------
def init_params(key, state_embedding_dims, node_embedding_dims,
                edge_embedding_dims, edge_hidden_dim, node_hidden_dim):
    state_dim = len(state_embedding_dims)
    node_emb_dim = 2 * sum(state_embedding_dims) + sum(node_embedding_dims)
    edge_emb_dim = sum(edge_embedding_dims)

    keys = iter(jax.random.split(key, 64))

    def glorot(shape):
        fan_in, fan_out = shape
        lim = float(np.sqrt(6.0 / (fan_in + fan_out)))
        return jax.random.uniform(next(keys), shape, jnp.float32, -lim, lim)

    def block_encoder(per_col_dims):
        """Per-column Linear(1, d_j) stacked into one block-structured matrix."""
        total = sum(per_col_dims)
        w = np.zeros((len(per_col_dims), total), np.float32)
        off = 0
        for j, d in enumerate(per_col_dims):
            w[j, off:off + d] = np.asarray(glorot((1, d)))[0]
            off += d
        return jnp.asarray(w), glorot((1, total))

    # node encoder = [state_encoder(sin, cos) | encoder node-attr branch]
    node_enc_dims = list(2 * state_embedding_dims) + list(node_embedding_dims)
    wne, bne = block_encoder(node_enc_dims)
    wee, bee = block_encoder(list(edge_embedding_dims))

    w1 = glorot((2 * node_emb_dim + edge_emb_dim, edge_hidden_dim))
    return dict(
        wne=wne, bne=bne, wee=wee, bee=bee,
        w1s=w1[:node_emb_dim],
        w1d=w1[node_emb_dim:2 * node_emb_dim],
        w1e=w1[2 * node_emb_dim:],
        b1=glorot((1, edge_hidden_dim)),
        w2=glorot((edge_hidden_dim, edge_emb_dim)),
        b2=glorot((1, edge_emb_dim)),
        v1=glorot((edge_emb_dim, node_hidden_dim)),
        c1=glorot((1, node_hidden_dim)),
        v2=glorot((node_hidden_dim, node_emb_dim)),
        c2=glorot((1, node_emb_dim)),
        wd=glorot((node_emb_dim, state_dim)),
        bd=glorot((1, state_dim)),
    )


# ---------------------------------------------------------------------------
# Pure-JAX reference (module semantics: gather + segment_sum, f32 everywhere)
# ---------------------------------------------------------------------------
def reference_forward(params, x, edge_index, batch, node_attr, edge_attr, glob_attr):
    del glob_attr
    row, col = edge_index[0], edge_index[1]
    node_in = jnp.concatenate([jnp.sin(x), jnp.cos(x), node_attr], axis=-1)
    node_emb = node_in @ params["wne"] + params["bne"]
    edge_emb = edge_attr @ params["wee"] + params["bee"]
    w1 = jnp.concatenate([params["w1s"], params["w1d"], params["w1e"]], axis=0)
    e_in = jnp.concatenate([node_emb[row], node_emb[col], edge_emb], axis=-1)
    h = jnp.maximum(e_in @ w1 + params["b1"], 0.0)
    edge_prime = h @ params["w2"] + params["b2"]
    edge_bar = jax.ops.segment_sum(edge_prime, col, num_segments=batch.shape[0])
    h2 = jnp.maximum(edge_bar @ params["v1"] + params["c1"], 0.0)
    w = h2 @ params["v2"] + params["c2"]
    return w @ params["wd"] + params["bd"]


if __name__ == "__main__":
    # Hyperparameters (small, consistent with the module's constructor)
    state_embedding_dims = [8]   # state_dim = 1
    node_embedding_dims = [8]    # node_attr_dim = 1
    edge_embedding_dims = [8]    # edge_attr_dim = 1
    edge_hidden_dim = 32
    node_hidden_dim = 32

    BN, BE, B = 128, 300, 2      # 300 edges -> 2 splits x 2 tiles of 128 (padding)

    key = jax.random.PRNGKey(0)
    k_x, k_na, k_ea, k_ei, k_p = jax.random.split(key, 5)

    x = jax.random.normal(k_x, (BN, 1), jnp.float32) * np.pi
    node_attr = jax.random.normal(k_na, (BN, 1), jnp.float32)
    edge_attr = jax.random.normal(k_ea, (BE, 1), jnp.float32)
    edge_index = jax.random.randint(k_ei, (2, BE), 0, BN, jnp.int32)
    batch = jnp.repeat(jnp.arange(B, dtype=jnp.int32), BN // B)
    glob_attr = jnp.zeros((B, 0), jnp.float32)

    params = init_params(k_p, state_embedding_dims, node_embedding_dims,
                         edge_embedding_dims, edge_hidden_dim, node_hidden_dim)

    out = kuramoto_forward(params, x, edge_index, batch, node_attr, edge_attr,
                           glob_attr, edge_tile=128, n_edge_splits=2)
    out = jax.block_until_ready(out)

    ref = reference_forward(params, x, edge_index, batch, node_attr, edge_attr,
                            glob_attr)
    ref = jax.block_until_ready(ref)

    assert out.shape == (BN, len(state_embedding_dims))
    # Gather/scatter + phi_e layer 1 run on the bf16 MXU with f32 accumulation,
    # so compare against the f32-semantics reference at bf16-level tolerance.
    np.testing.assert_allclose(np.asarray(out), np.asarray(ref),
                               rtol=5e-2, atol=5e-2)
    print("KERNEL_OK")
</pallas_src>

<mosaic_0001>
module attributes {stable_mosaic.version = 11 : i64} {
  func.func @kuramoto_edge_kernel(%arg0: i32, %arg1: i32, %arg2: memref<128x2xi32, #tpu.memory_space<vmem>>, %arg3: memref<1x128xi32, #tpu.memory_space<vmem>>, %arg4: memref<128x1xbf16, #tpu.memory_space<vmem>>, %arg5: memref<256x32xbf16, #tpu.memory_space<vmem>>, %arg6: memref<1x32xbf16, #tpu.memory_space<vmem>>, %arg7: memref<1x32xf32, #tpu.memory_space<vmem>>, %arg8: memref<32x8xf32, #tpu.memory_space<vmem>>, %arg9: memref<1x8xf32, #tpu.memory_space<vmem>>, %arg10: memref<1x128x8xf32, #tpu.memory_space<vmem>>, %arg11: memref<128x8xf32, #tpu.memory_space<vmem>>) attributes {dimension_semantics = [#tpu.dimension_semantics<parallel>, #tpu.dimension_semantics<arbitrary>], iteration_bounds = array<i64: 2, 2>, scalar_prefetch = 0 : i64, scratch_operands = 1 : i64, tpu.core_type = #tpu.core_type<tc>, window_params = [{transform_indices = @transform_0, window_bounds = array<i64: 128, 2>}, {transform_indices = @transform_1, window_bounds = array<i64: 1, 128>}, {transform_indices = @transform_2, window_bounds = array<i64: 128, 1>}, {pipeline_mode = #tpu.pipeline_mode<synchronous>, transform_indices = @transform_3, window_bounds = array<i64: 256, 32>}, {pipeline_mode = #tpu.pipeline_mode<synchronous>, transform_indices = @transform_4, window_bounds = array<i64: 1, 32>}, {pipeline_mode = #tpu.pipeline_mode<synchronous>, transform_indices = @transform_5, window_bounds = array<i64: 1, 32>}, {pipeline_mode = #tpu.pipeline_mode<synchronous>, transform_indices = @transform_6, window_bounds = array<i64: 32, 8>}, {pipeline_mode = #tpu.pipeline_mode<synchronous>, transform_indices = @transform_7, window_bounds = array<i64: 1, 8>}, {transform_indices = @transform_8, window_bounds = array<i64: 1, 128, 8>}]} {
    %c0_i32 = arith.constant 0 : i32
    %0 = arith.cmpi eq, %arg1, %c0_i32 : i32
    %1 = arith.extui %0 : i1 to i32
    %c0_i32_0 = arith.constant 0 : i32
    %2 = arith.cmpi ne, %1, %c0_i32_0 : i32
    scf.if %2 {
      %cst_25 = arith.constant 0.000000e+00 : f32
      %48 = vector.broadcast %cst_25 : f32 to vector<128x8xf32>
      %c0_26 = arith.constant 0 : index
      %c0_27 = arith.constant 0 : index
      %49 = vector.load %arg11[%c0_26, %c0_27] : memref<128x8xf32, #tpu.memory_space<vmem>>, vector<128x8xf32>
      tpu.vector_store %arg11[%c0_26, %c0_27], %48 {strides = array<i32>} : memref<128x8xf32, #tpu.memory_space<vmem>>, vector<128x8xf32>,
    } else {
    }
    %c0 = arith.constant 0 : index
    %c0_1 = arith.constant 0 : index
    %3 = vector.load %arg2[%c0, %c0_1] : memref<128x2xi32, #tpu.memory_space<vmem>>, vector<128x2xi32>
    %4 = vector.extract_strided_slice %3 {offsets = [0, 0], sizes = [128, 1], strides = [1, 1]} : vector<128x2xi32> to vector<128x1xi32>
    %5 = vector.extract_strided_slice %3 {offsets = [0, 1], sizes = [128, 1], strides = [1, 1]} : vector<128x2xi32> to vector<128x1xi32>
    %6 = tpu.iota {dimensions = array<i32: 1>} : vector<128x256xi32>
    %7 = vector.broadcast %4 : vector<128x1xi32> to vector<128x256xi32>
    %8 = arith.cmpi eq, %6, %7 : vector<128x256xi32>
    %c128_i32 = arith.constant 128 : i32
    %9 = vector.broadcast %c128_i32 : i32 to vector<128x1xi32>
    %10 = arith.addi %5, %9 : vector<128x1xi32>
    %11 = vector.broadcast %10 : vector<128x1xi32> to vector<128x256xi32>
    %12 = arith.cmpi eq, %6, %11 : vector<128x256xi32>
    %13 = arith.ori %8, %12 : vector<128x256xi1>
    %14 = arith.extui %13 : vector<128x256xi1> to vector<128x256xi32>
    %15 = arith.sitofp %14 : vector<128x256xi32> to vector<128x256xf32>
    %16 = arith.truncf %15 : vector<128x256xf32> to vector<128x256xbf16>
    %c0_2 = arith.constant 0 : index
    %c0_3 = arith.constant 0 : index
    %17 = vector.load %arg5[%c0_2, %c0_3] : memref<256x32xbf16, #tpu.memory_space<vmem>>, vector<256x32xbf16>
    %cst = arith.constant dense<0.000000e+00> : vector<128x32xf32>
    %18 = tpu.matmul %16, %17, %cst {dimension_numbers = #tpu.dot_dimension_numbers<[1], [0], [0], [1], [0, 0, 1, 1], [], []>} : vector<128x256xbf16>, vector<256x32xbf16>, vector<128x32xf32> -> vector<128x32xf32>
    %c0_4 = arith.constant 0 : index
    %c0_5 = arith.constant 0 : index
    %19 = vector.load %arg4[%c0_4, %c0_5] : memref<128x1xbf16, #tpu.memory_space<vmem>>, vector<128x1xbf16>
    %c0_6 = arith.constant 0 : index
    %c0_7 = arith.constant 0 : index
    %20 = vector.load %arg6[%c0_6, %c0_7] : memref<1x32xbf16, #tpu.memory_space<vmem>>, vector<1x32xbf16>
    %cst_8 = arith.constant dense<0.000000e+00> : vector<128x32xf32>
    %21 = tpu.matmul %19, %20, %cst_8 {dimension_numbers = #tpu.dot_dimension_numbers<[1], [0], [0], [1], [0, 0, 1, 1], [], []>} : vector<128x1xbf16>, vector<1x32xbf16>, vector<128x32xf32> -> vector<128x32xf32>
    %22 = arith.addf %18, %21 : vector<128x32xf32>
    %c0_9 = arith.constant 0 : index
    %c0_10 = arith.constant 0 : index
    %23 = vector.load %arg7[%c0_9, %c0_10] : memref<1x32xf32, #tpu.memory_space<vmem>>, vector<1x32xf32>
    %24 = vector.broadcast %23 : vector<1x32xf32> to vector<128x32xf32>
    %25 = arith.addf %22, %24 : vector<128x32xf32>
    %cst_11 = arith.constant 0.000000e+00 : f32
    %26 = vector.broadcast %cst_11 : f32 to vector<128x32xf32>
    %27 = arith.maximumf %25, %26 : vector<128x32xf32>
    %c0_12 = arith.constant 0 : index
    %c0_13 = arith.constant 0 : index
    %28 = vector.load %arg8[%c0_12, %c0_13] : memref<32x8xf32, #tpu.memory_space<vmem>>, vector<32x8xf32>
    %cst_14 = arith.constant dense<0.000000e+00> : vector<128x8xf32>
    %29 = tpu.matmul %27, %28, %cst_14 {dimension_numbers = #tpu.dot_dimension_numbers<[1], [0], [0], [1], [0, 0, 1, 1], [], []>} : vector<128x32xf32>, vector<32x8xf32>, vector<128x8xf32> -> vector<128x8xf32>
    %c0_15 = arith.constant 0 : index
    %c0_16 = arith.constant 0 : index
    %30 = vector.load %arg9[%c0_15, %c0_16] : memref<1x8xf32, #tpu.memory_space<vmem>>, vector<1x8xf32>
    %31 = vector.broadcast %30 : vector<1x8xf32> to vector<128x8xf32>
    %32 = arith.addf %29, %31 : vector<128x8xf32>
    %33 = arith.truncf %32 : vector<128x8xf32> to vector<128x8xbf16>
    %34 = tpu.iota {dimensions = array<i32: 0>} : vector<128x128xi32>
    %c0_17 = arith.constant 0 : index
    %c0_18 = arith.constant 0 : index
    %35 = vector.load %arg3[%c0_17, %c0_18] : memref<1x128xi32, #tpu.memory_space<vmem>>, vector<1x128xi32>
    %36 = vector.broadcast %35 : vector<1x128xi32> to vector<128x128xi32>
    %37 = arith.cmpi eq, %34, %36 : vector<128x128xi32>
    %38 = arith.extui %37 : vector<128x128xi1> to vector<128x128xi32>
    %39 = arith.sitofp %38 : vector<128x128xi32> to vector<128x128xf32>
    %40 = arith.truncf %39 : vector<128x128xf32> to vector<128x128xbf16>
    %c0_19 = arith.constant 0 : index
    %c0_20 = arith.constant 0 : index
    %41 = vector.load %arg11[%c0_19, %c0_20] : memref<128x8xf32, #tpu.memory_space<vmem>>, vector<128x8xf32>
    %cst_21 = arith.constant dense<0.000000e+00> : vector<128x8xf32>
    %42 = tpu.matmul %40, %33, %cst_21 {dimension_numbers = #tpu.dot_dimension_numbers<[1], [0], [0], [1], [0, 0, 1, 1], [], []>} : vector<128x128xbf16>, vector<128x8xbf16>, vector<128x8xf32> -> vector<128x8xf32>
    %43 = arith.addf %41, %42 : vector<128x8xf32>
    %c0_22 = arith.constant 0 : index
    %c0_23 = arith.constant 0 : index
    %44 = vector.load %arg11[%c0_22, %c0_23] : memref<128x8xf32, #tpu.memory_space<vmem>>, vector<128x8xf32>
    tpu.vector_store %arg11[%c0_22, %c0_23], %43 {strides = array<i32>} : memref<128x8xf32, #tpu.memory_space<vmem>>, vector<128x8xf32>,
    %c1_i32 = arith.constant 1 : i32
    %45 = arith.cmpi eq, %arg1, %c1_i32 : i32
    %46 = arith.extui %45 : i1 to i32
    %c0_i32_24 = arith.constant 0 : i32
    %47 = arith.cmpi ne, %46, %c0_i32_24 : i32
    scf.if %47 {
      %c0_25 = arith.constant 0 : index
      %c0_26 = arith.constant 0 : index
      %48 = vector.load %arg11[%c0_25, %c0_26] : memref<128x8xf32, #tpu.memory_space<vmem>>, vector<128x8xf32>
      %c0_27 = arith.constant 0 : index
      %c0_28 = arith.constant 0 : index
      %c0_29 = arith.constant 0 : index
      %49 = vector.load %arg10[%c0_27, %c0_28, %c0_29] : memref<1x128x8xf32, #tpu.memory_space<vmem>>, vector<1x128x8xf32>
      %50 = vector.shape_cast %49 : vector<1x128x8xf32> to vector<128x8xf32>
      %51 = vector.shape_cast %48 : vector<128x8xf32> to vector<1x128x8xf32>
      tpu.vector_store %arg10[%c0_27, %c0_28, %c0_29], %51 {strides = array<i32>} : memref<1x128x8xf32, #tpu.memory_space<vmem>>, vector<1x128x8xf32>,
    } else {
    }
    return
  }
  func.func @transform_0(%arg0: i32, %arg1: i32) -> (i32, i32) {
    %c2_i32 = arith.constant 2 : i32
    %0 = arith.muli %arg0, %c2_i32 : i32
    %1 = arith.addi %0, %arg1 : i32
    %c0_i32 = arith.constant 0 : i32
    %c0_i32_0 = arith.constant 0 : i32
    return %1, %c0_i32 : i32, i32
  }
  func.func @transform_1(%arg0: i32, %arg1: i32) -> (i32, i32) {
    %c2_i32 = arith.constant 2 : i32
    %0 = arith.muli %arg0, %c2_i32 : i32
    %1 = arith.addi %0, %arg1 : i32
    %c0_i32 = arith.constant 0 : i32
    %c0_i32_0 = arith.constant 0 : i32
    return %c0_i32, %1 : i32, i32
  }
  func.func @transform_2(%arg0: i32, %arg1: i32) -> (i32, i32) {
    %c2_i32 = arith.constant 2 : i32
    %0 = arith.muli %arg0, %c2_i32 : i32
    %1 = arith.addi %0, %arg1 : i32
    %c0_i32 = arith.constant 0 : i32
    %c0_i32_0 = arith.constant 0 : i32
    return %1, %c0_i32 : i32, i32
  }
  func.func @transform_3(%arg0: i32, %arg1: i32) -> (i32, i32) {
    %c0_i32 = arith.constant 0 : i32
    %c0_i32_0 = arith.constant 0 : i32
    %c0_i32_1 = arith.constant 0 : i32
    return %c0_i32, %c0_i32_0 : i32, i32
  }
  func.func @transform_4(%arg0: i32, %arg1: i32) -> (i32, i32) {
    %c0_i32 = arith.constant 0 : i32
    %c0_i32_0 = arith.constant 0 : i32
    %c0_i32_1 = arith.constant 0 : i32
    return %c0_i32, %c0_i32_0 : i32, i32
  }
  func.func @transform_5(%arg0: i32, %arg1: i32) -> (i32, i32) {
    %c0_i32 = arith.constant 0 : i32
    %c0_i32_0 = arith.constant 0 : i32
    %c0_i32_1 = arith.constant 0 : i32
    return %c0_i32, %c0_i32_0 : i32, i32
  }
  func.func @transform_6(%arg0: i32, %arg1: i32) -> (i32, i32) {
    %c0_i32 = arith.constant 0 : i32
    %c0_i32_0 = arith.constant 0 : i32
    %c0_i32_1 = arith.constant 0 : i32
    return %c0_i32, %c0_i32_0 : i32, i32
  }
  func.func @transform_7(%arg0: i32, %arg1: i32) -> (i32, i32) {
    %c0_i32 = arith.constant 0 : i32
    %c0_i32_0 = arith.constant 0 : i32
    %c0_i32_1 = arith.constant 0 : i32
    return %c0_i32, %c0_i32_0 : i32, i32
  }
  func.func @transform_8(%arg0: i32, %arg1: i32) -> (i32, i32, i32) {
    %c0_i32 = arith.constant 0 : i32
    %c0_i32_0 = arith.constant 0 : i32
    %c0_i32_1 = arith.constant 0 : i32
    return %arg0, %c0_i32, %c0_i32_0 : i32, i32, i32
  }
}

</mosaic_0001>

<llo_original>
// kernel: tpu_custom_call.1
$region0: #{tpu_custom_call.1}
  #allocation0 [shape = 'u32[]', space=smem, size = 0x4, offset = 0x4, fixed_abs, tag = 'smem constant byte address 0x4 - core index']
  #allocation1 [shape = 'u32[144,128]{1,0:T(1,128)}', space=vmem, size = 0x12000, scoped, tag = 'internal scratch']
  #allocation2 [shape = 'f32[128,8]{1,0:T(8,128)}', space=vmem, size = 0x10000, scoped, tag = 'scratch operand']
  %s0 = inlined_call_operand.vmem [shape: s32[512,2], index: 0, kind: input, shape index: {}]
  %s1 = inlined_call_operand.vmem [shape: s32[1,512], index: 1, kind: input, shape index: {}]
  %s2 = inlined_call_operand.vmem [shape: bf16[512,1], index: 2, kind: input, shape index: {}]
  %s3 = inlined_call_operand.vmem [shape: bf16[256,32], index: 3, kind: input, shape index: {}]
  %s4 = inlined_call_operand.vmem [shape: bf16[1,32], index: 4, kind: input, shape index: {}]
  %s5 = inlined_call_operand.vmem [shape: f32[1,32], index: 5, kind: input, shape index: {}]
  %s6 = inlined_call_operand.vmem [shape: f32[32,8], index: 6, kind: input, shape index: {}]
  %s7 = inlined_call_operand.vmem [shape: f32[1,8], index: 7, kind: input, shape index: {}]
  %s8 = inlined_call_operand.vmem [shape: f32[2,128,8], index: 8, kind: output, shape index: {}]
  %s9 = sld [smem:[#allocation0]]
  $region73: #{tpu_custom_call.1} parent=0
    _
  %s11 = ssub.s32 1, %s9
  %s12 = scalar_select 0, %s11, %s9
  loop: start=0, step=1, limit=6
  $region2: #{tpu_custom_call.1} parent=0 // loop_pre_header
    _
  $region3: #{tpu_custom_call.1} parent=0 // loop_header
    %s14 = sphi 0, %s18
    %p15 = scmp.ge.s32.totalorder %s14, 6
    %s21 = sphi 0, %s33
    %s22 = sphi 0, %s29
    %s23 = sphi 0, %s21
    %s24 = sphi 0, %s22
    %s25 = sphi 0, %s23
    %s26 = sphi 0, %s24
    %s40 = sphi 0, %s42
    %s43 = sphi 0, %s40
    %s44 = sphi 0, %s43
    %s60 = sphi 0, %s44
    %s70 = sphi 0, %s72
    %s73 = sphi 0, %s70
    %s74 = sphi 0, %s73
    %s90 = sphi 0, %s74
    %s100 = sphi 0, %s102
    %s103 = sphi 0, %s100
    %s104 = sphi 0, %s103
    %s120 = sphi 0, %s104
    %s124 = sphi 0, %s124
    %s126 = sphi 0, %s124
    %s127 = sphi 0, %s126
    %s141 = sphi 0, %s127
    %s145 = sphi 0, %s145
    %s147 = sphi 0, %s145
    %s148 = sphi 0, %s147
    %s162 = sphi 0, %s148
    %s166 = sphi 0, %s166
    %s168 = sphi 0, %s166
    %s169 = sphi 0, %s168
    %s183 = sphi 0, %s169
    %s187 = sphi 0, %s187
    %s189 = sphi 0, %s187
    %s190 = sphi 0, %s189
    %s204 = sphi 0, %s190
    %s208 = sphi 0, %s208
    %s210 = sphi 0, %s208
    %s211 = sphi 0, %s210
    %s225 = sphi 0, %s211
    %s231 = sphi 0, %s233
    %s234 = sphi 0, %s231
    %s235 = sphi 0, %s234
    %s251 = sphi 0, %s235
  $region4: #{tpu_custom_call.1} parent=0 // loop_header_branch
    %17 = sbr.rel (%p15) target = $region8
  $region5: #{tpu_custom_call.1} parent=0 // loop_body
    %s19 = ssub.s32 %s14, 1
    %s20 = ssub.s32 %s14, 2
    %s27 = sadd.s32 1, %s22
    %p28 = scmp.ge.s32.totalorder %s27, 2
    %s29 = scalar_select %p28, 0, %s27
    %s30 = sadd.s32 1, %s21
    %s31 = scalar_select %p28, %s30, %s21
    %p32 = scmp.ge.s32.totalorder %s31, 2
    %s33 = scalar_select %p32, 0, %s31
    %s34 = smul.u32 %s21, 2
    %s35 = sadd.s32 %s34, %s22
    %s36 = smul.u32 %s33, 2
    %s37 = sadd.s32 %s36, %s29
    %s38 = ssub.s32 %s35, %s37
    %p39 = scmp.eq.s32.totalorder %s38, 0
    %s41 = sadd.s32 %s40, 1
    %s42 = scalar_select %p39, %s40, %s41
    %p45 = pneg %p39
    %p46 = scmp.eq.s32.totalorder %s14, 3
    %p47 = por %p45, %p46
    %p48 = scmp.ne.s32.totalorder %s40, %s43
    %p49 = scmp.eq.s32.totalorder %s14, 0
    %p50 = por %p48, %p49
    %p51 = scmp.ne.s32.totalorder %s40, %s43
    %p52 = scmp.eq.s32.totalorder %s19, 3
    %p53 = por %p51, %p52
    %p54 = scmp.ne.s32.totalorder %s43, %s44
    %p55 = scmp.eq.s32.totalorder %s19, 0
    %p56 = por %p54, %p55
    %p57 = scmp.ne.s32.totalorder %s43, %s44
    %p58 = scmp.eq.s32.totalorder %s20, 3
    %p59 = por %p57, %p58
    %p61 = scmp.ne.s32.totalorder %s44, %s60
    %p62 = scmp.eq.s32.totalorder %s20, 0
    %p63 = por %p61, %p62
    %s64 = smul.u32 %s21, 2
    %s65 = sadd.s32 %s64, %s22
    %s66 = smul.u32 %s33, 2
    %s67 = sadd.s32 %s66, %s29
    %s68 = ssub.s32 %s65, %s67
    %p69 = scmp.eq.s32.totalorder %s68, 0
    %s71 = sadd.s32 %s70, 1
    %s72 = scalar_select %p69, %s70, %s71
    %p75 = pneg %p69
    %p76 = scmp.eq.s32.totalorder %s14, 3
    %p77 = por %p75, %p76
    %p78 = scmp.ne.s32.totalorder %s70, %s73
    %p79 = scmp.eq.s32.totalorder %s14, 0
    %p80 = por %p78, %p79
    %p81 = scmp.ne.s32.totalorder %s70, %s73
    %p82 = scmp.eq.s32.totalorder %s19, 3
    %p83 = por %p81, %p82
    %p84 = scmp.ne.s32.totalorder %s73, %s74
    %p85 = scmp.eq.s32.totalorder %s19, 0
    %p86 = por %p84, %p85
    %p87 = scmp.ne.s32.totalorder %s73, %s74
    %p88 = scmp.eq.s32.totalorder %s20, 3
    %p89 = por %p87, %p88
    %p91 = scmp.ne.s32.totalorder %s74, %s90
    %p92 = scmp.eq.s32.totalorder %s20, 0
    %p93 = por %p91, %p92
    %s94 = smul.u32 %s21, 2
    %s95 = sadd.s32 %s94, %s22
    %s96 = smul.u32 %s33, 2
    %s97 = sadd.s32 %s96, %s29
    %s98 = ssub.s32 %s95, %s97
    %p99 = scmp.eq.s32.totalorder %s98, 0
    %s101 = sadd.s32 %s100, 1
    %s102 = scalar_select %p99, %s100, %s101
    %p105 = pneg %p99
    %p106 = scmp.eq.s32.totalorder %s14, 3
    %p107 = por %p105, %p106
    %p108 = scmp.ne.s32.totalorder %s100, %s103
    %p109 = scmp.eq.s32.totalorder %s14, 0
    %p110 = por %p108, %p109
    %p111 = scmp.ne.s32.totalorder %s100, %s103
    %p112 = scmp.eq.s32.totalorder %s19, 3
    %p113 = por %p111, %p112
    %p114 = scmp.ne.s32.totalorder %s103, %s104
    %p115 = scmp.eq.s32.totalorder %s19, 0
    %p116 = por %p114, %p115
    %p117 = scmp.ne.s32.totalorder %s103, %s104
    %p118 = scmp.eq.s32.totalorder %s20, 3
    %p119 = por %p117, %p118
    %p121 = scmp.ne.s32.totalorder %s104, %s120
    %p122 = scmp.eq.s32.totalorder %s20, 0
    %p123 = por %p121, %p122
    %s125 = sadd.s32 %s124, 1
    %p128 = scmp.eq.s32.totalorder %s14, 3
    %p129 = scmp.ne.s32.totalorder %s124, %s126
    %p130 = scmp.eq.s32.totalorder %s14, 0
    %p131 = por %p129, %p130
    %p132 = scmp.ne.s32.totalorder %s124, %s126
    %p133 = scmp.eq.s32.totalorder %s19, 3
    %p134 = por %p132, %p133
    %p135 = scmp.ne.s32.totalorder %s126, %s127
    %p136 = scmp.eq.s32.totalorder %s19, 0
    %p137 = por %p135, %p136
    %p138 = scmp.ne.s32.totalorder %s126, %s127
    %p139 = scmp.eq.s32.totalorder %s20, 3
    %p140 = por %p138, %p139
    %p142 = scmp.ne.s32.totalorder %s127, %s141
    %p143 = scmp.eq.s32.totalorder %s20, 0
    %p144 = por %p142, %p143
    %s146 = sadd.s32 %s145, 1
    %p149 = scmp.eq.s32.totalorder %s14, 3
    %p150 = scmp.ne.s32.totalorder %s145, %s147
    %p151 = scmp.eq.s32.totalorder %s14, 0
    %p152 = por %p150, %p151
    %p153 = scmp.ne.s32.totalorder %s145, %s147
    %p154 = scmp.eq.s32.totalorder %s19, 3
    %p155 = por %p153, %p154
    %p156 = scmp.ne.s32.totalorder %s147, %s148
    %p157 = scmp.eq.s32.totalorder %s19, 0
    %p158 = por %p156, %p157
    %p159 = scmp.ne.s32.totalorder %s147, %s148
    %p160 = scmp.eq.s32.totalorder %s20, 3
    %p161 = por %p159, %p160
    %p163 = scmp.ne.s32.totalorder %s148, %s162
    %p164 = scmp.eq.s32.totalorder %s20, 0
    %p165 = por %p163, %p164
    %s167 = sadd.s32 %s166, 1
    %p170 = scmp.eq.s32.totalorder %s14, 3
    %p171 = scmp.ne.s32.totalorder %s166, %s168
    %p172 = scmp.eq.s32.totalorder %s14, 0
    %p173 = por %p171, %p172
    %p174 = scmp.ne.s32.totalorder %s166, %s168
    %p175 = scmp.eq.s32.totalorder %s19, 3
    %p176 = por %p174, %p175
    %p177 = scmp.ne.s32.totalorder %s168, %s169
    %p178 = scmp.eq.s32.totalorder %s19, 0
    %p179 = por %p177, %p178
    %p180 = scmp.ne.s32.totalorder %s168, %s169
    %p181 = scmp.eq.s32.totalorder %s20, 3
    %p182 = por %p180, %p181
    %p184 = scmp.ne.s32.totalorder %s169, %s183
    %p185 = scmp.eq.s32.totalorder %s20, 0
    %p186 = por %p184, %p185
    %s188 = sadd.s32 %s187, 1
    %p191 = scmp.eq.s32.totalorder %s14, 3
    %p192 = scmp.ne.s32.totalorder %s187, %s189
    %p193 = scmp.eq.s32.totalorder %s14, 0
    %p194 = por %p192, %p193
    %p195 = scmp.ne.s32.totalorder %s187, %s189
    %p196 = scmp.eq.s32.totalorder %s19, 3
    %p197 = por %p195, %p196
    %p198 = scmp.ne.s32.totalorder %s189, %s190
    %p199 = scmp.eq.s32.totalorder %s19, 0
    %p200 = por %p198, %p199
    %p201 = scmp.ne.s32.totalorder %s189, %s190
    %p202 = scmp.eq.s32.totalorder %s20, 3
    %p203 = por %p201, %p202
    %p205 = scmp.ne.s32.totalorder %s190, %s204
    %p206 = scmp.eq.s32.totalorder %s20, 0
    %p207 = por %p205, %p206
    %s209 = sadd.s32 %s208, 1
    %p212 = scmp.eq.s32.totalorder %s14, 3
    %p213 = scmp.ne.s32.totalorder %s208, %s210
    %p214 = scmp.eq.s32.totalorder %s14, 0
    %p215 = por %p213, %p214
    %p216 = scmp.ne.s32.totalorder %s208, %s210
    %p217 = scmp.eq.s32.totalorder %s19, 3
    %p218 = por %p216, %p217
    %p219 = scmp.ne.s32.totalorder %s210, %s211
    %p220 = scmp.eq.s32.totalorder %s19, 0
    %p221 = por %p219, %p220
    %p222 = scmp.ne.s32.totalorder %s210, %s211
    %p223 = scmp.eq.s32.totalorder %s20, 3
    %p224 = por %p222, %p223
    %p226 = scmp.ne.s32.totalorder %s211, %s225
    %p227 = scmp.eq.s32.totalorder %s20, 0
    %p228 = por %p226, %p227
    %s229 = ssub.s32 %s21, %s33
    %p230 = scmp.eq.s32.totalorder %s229, 0
    %s232 = sadd.s32 %s231, 1
    %s233 = scalar_select %p230, %s231, %s232
    %p236 = pneg %p230
    %p237 = scmp.eq.s32.totalorder %s14, 3
    %p238 = por %p236, %p237
    %p239 = scmp.ne.s32.totalorder %s231, %s234
    %p240 = scmp.eq.s32.totalorder %s14, 0
    %p241 = por %p239, %p240
    %p242 = scmp.ne.s32.totalorder %s231, %s234
    %p243 = scmp.eq.s32.totalorder %s19, 3
    %p244 = por %p242, %p243
    %p245 = scmp.ne.s32.totalorder %s234, %s235
    %p246 = scmp.eq.s32.totalorder %s19, 0
    %p247 = por %p245, %p246
    %p248 = scmp.ne.s32.totalorder %s234, %s235
    %p249 = scmp.eq.s32.totalorder %s20, 3
    %p250 = por %p248, %p249
    %p252 = scmp.ne.s32.totalorder %s235, %s251
    %p253 = scmp.eq.s32.totalorder %s20, 0
    %p254 = por %p252, %p253
    %p255 = scmp.le.s32.totalorder 1, %s14
    %p256 = scmp.lt.s32.totalorder %s14, 5
    %p257 = pnand %p255, %p256
    %p258 = pneg %p257
    // Predicated region
    $region9: #{tpu_custom_call.1} parent=5 // pred_check
      _
    $region10: #{tpu_custom_call.1} parent=5 // pred_check_branch
      %260 = sbr.rel (%p257) target = $region12
    $region11: #{tpu_custom_call.1} parent=5 // pred_region
      %s261 = ssub.s32 %s14, 1
      // Predicated region
      $region13: #{tpu_custom_call.1} parent=11 // pred_check
        %p262 = pneg %p137
      $region14: #{tpu_custom_call.1} parent=11 // pred_check_branch
        %264 = sbr.rel (%p262) target = $region16
      $region15: #{tpu_custom_call.1} parent=11 // pred_region
        _
      $region16: #{tpu_custom_call.1} parent=11 // pred_fallthru
        _
      // Predicated region
      $region17: #{tpu_custom_call.1} parent=11 // pred_check
        %p265 = pneg %p158
      $region18: #{tpu_custom_call.1} parent=11 // pred_check_branch
        %267 = sbr.rel (%p265) target = $region20
      $region19: #{tpu_custom_call.1} parent=11 // pred_region
        _
      $region20: #{tpu_custom_call.1} parent=11 // pred_fallthru
        _
      // Predicated region
      $region21: #{tpu_custom_call.1} parent=11 // pred_check
        %p268 = pneg %p179
      $region22: #{tpu_custom_call.1} parent=11 // pred_check_branch
        %270 = sbr.rel (%p268) target = $region24
      $region23: #{tpu_custom_call.1} parent=11 // pred_region
        _
      $region24: #{tpu_custom_call.1} parent=11 // pred_fallthru
        _
      // Predicated region
      $region25: #{tpu_custom_call.1} parent=11 // pred_check
        %p271 = pneg %p200
      $region26: #{tpu_custom_call.1} parent=11 // pred_check_branch
        %273 = sbr.rel (%p271) target = $region28
      $region27: #{tpu_custom_call.1} parent=11 // pred_region
        _
      $region28: #{tpu_custom_call.1} parent=11 // pred_fallthru
        _
      // Predicated region
      $region29: #{tpu_custom_call.1} parent=11 // pred_check
        %p274 = pneg %p221
      $region30: #{tpu_custom_call.1} parent=11 // pred_check_branch
        %276 = sbr.rel (%p274) target = $region32
      $region31: #{tpu_custom_call.1} parent=11 // pred_region
        _
      $region32: #{tpu_custom_call.1} parent=11 // pred_fallthru
        _
    $region12: #{tpu_custom_call.1} parent=5 // pred_fallthru
      _
    %p277 = scmp.lt.s32.totalorder %s14, 4
    // Predicated region
    $region33: #{tpu_custom_call.1} parent=5 // pred_check
      %p278 = pneg %p277
    $region34: #{tpu_custom_call.1} parent=5 // pred_check_branch
      %280 = sbr.rel (%p278) target = $region36
    $region35: #{tpu_custom_call.1} parent=5 // pred_region
      // Predicated region
      $region37: #{tpu_custom_call.1} parent=35 // pred_check
        %p281 = pneg %p50
      $region38: #{tpu_custom_call.1} parent=35 // pred_check_branch
        %283 = sbr.rel (%p281) target = $region40
      $region39: #{tpu_custom_call.1} parent=35 // pred_region
        %s284 = smul.u32 %s21, 2
        %s285 = sadd.s32 %s284, %s22
        %s286 = smul.u32 16, %s285
        %p287 = scmp.lt.s32.totalorder %s286, 63
        %s288 = scalar_select %p287, %s286, 63
        %s289 = smul.addr %s288, 8
        %s290 = scalar_lea.vmem %s0, %s289
        %s291 = smul.u32 %s21, 2
        %s292 = sadd.s32 %s291, %s22
        %s293 = smul.u32 16, %s292
      $region40: #{tpu_custom_call.1} parent=35 // pred_fallthru
        _
      // Predicated region
      $region41: #{tpu_custom_call.1} parent=35 // pred_check
        %p294 = pneg %p80
      $region42: #{tpu_custom_call.1} parent=35 // pred_check_branch
        %296 = sbr.rel (%p294) target = $region44
      $region43: #{tpu_custom_call.1} parent=35 // pred_region
        %s297 = smul.u32 %s21, 2
        %s298 = sadd.s32 %s297, %s22
        %p299 = scmp.lt.s32.totalorder %s298, 3
        %s300 = scalar_select %p299, %s298, 3
        %s301 = scalar_lea.vmem %s1, %s300
        %s302 = smul.u32 %s21, 2
        %s303 = sadd.s32 %s302, %s22
      $region44: #{tpu_custom_call.1} parent=35 // pred_fallthru
        _
      // Predicated region
      $region45: #{tpu_custom_call.1} parent=35 // pred_check
        %p304 = pneg %p110
      $region46: #{tpu_custom_call.1} parent=35 // pred_check_branch
        %306 = sbr.rel (%p304) target = $region48
      $region47: #{tpu_custom_call.1} parent=35 // pred_region
        %s307 = smul.u32 %s21, 2
        %s308 = sadd.s32 %s307, %s22
        %s309 = smul.u32 16, %s308
        %p310 = scmp.lt.s32.totalorder %s309, 63
        %s311 = scalar_select %p310, %s309, 63
        %s312 = smul.addr %s311, 4
        %s313 = scalar_lea.vmem %s2, %s312
        %s314 = smul.u32 %s21, 2
        %s315 = sadd.s32 %s314, %s22
        %s316 = smul.u32 16, %s315
      $region48: #{tpu_custom_call.1} parent=35 // pred_fallthru
        _
    $region36: #{tpu_custom_call.1} parent=5 // pred_fallthru
      _
    %p317 = scmp.le.s32.totalorder 1, %s14
    %p318 = scmp.lt.s32.totalorder %s14, 5
    %p319 = pnand %p317, %p318
    %p320 = pneg %p319
    // Predicated region
    $region49: #{tpu_custom_call.1} parent=5 // pred_check
      _
    $region50: #{tpu_custom_call.1} parent=5 // pred_check_branch
      %322 = sbr.rel (%p319) target = $region52
    $region51: #{tpu_custom_call.1} parent=5 // pred_region
      %s323 = ssub.s32 %s14, 1
      %s324 = smul.u32 %s23, 2
      %s325 = sadd.s32 %s324, %s24
      %s326 = smul.u32 16, %s325
      %p327 = scmp.lt.s32.totalorder %s326, 63
      %s328 = scalar_select %p327, %s326, 63
      %s329 = smul.addr %s328, 8
      %s330 = scalar_lea.vmem %s0, %s329
      %p331 = pneg %p56
      %p332 = pneg %p53
      %s333 = smul.u32 %s23, 2
      %s334 = sadd.s32 %s333, %s24
      %p335 = scmp.lt.s32.totalorder %s334, 3
      %s336 = scalar_select %p335, %s334, 3
      %s337 = scalar_lea.vmem %s1, %s336
      %p338 = pneg %p86
      %p339 = pneg %p83
      %s340 = smul.u32 %s23, 2
      %s341 = sadd.s32 %s340, %s24
      %s342 = smul.u32 16, %s341
      %p343 = scmp.lt.s32.totalorder %s342, 63
      %s344 = scalar_select %p343, %s342, 63
      %s345 = smul.addr %s344, 4
      %s346 = scalar_lea.vmem %s2, %s345
      %p347 = pneg %p116
      %p348 = pneg %p113
      %p349 = pneg %p137
      %p350 = pneg %p134
      %p351 = pneg %p158
      %p352 = pneg %p155
      %p353 = pneg %p179
      %p354 = pneg %p176
      %p355 = pneg %p200
      %p356 = pneg %p197
      %p357 = pneg %p221
      %p358 = pneg %p218
      %p359 = pneg %p247
      %p360 = pneg %p244
      %p361 = scmp.lt.s32.totalorder %s23, 1
      %s362 = scalar_select %p361, %s23, 1
      %s363 = smul.addr %s362, 16
      %s364 = smul.addr %s363, 8
      %s365 = scalar_lea.vmem %s8, %s364
      %s366 = smul.u32 %s23, 2
      %s367 = sadd.s32 %s366, %s24
      %s368 = smul.u32 16, %s367
      %p369 = scmp.lt.s32.totalorder %s368, 63
      %s370 = scalar_select %p369, %s368, 63
      %s371 = smul.addr %s370, 8
      %s372 = scalar_lea.vmem %s0, %s371
      %s373 = smul.u32 %s23, 2
      %s374 = sadd.s32 %s373, %s24
      %s375 = smul.u32 16, %s374
      %s376 = smul.u32 %s23, 2
      %s377 = sadd.s32 %s376, %s24
      %p378 = scmp.lt.s32.totalorder %s377, 3
      %s379 = scalar_select %p378, %s377, 3
      %s380 = scalar_lea.vmem %s1, %s379
      %s381 = smul.u32 %s23, 2
      %s382 = sadd.s32 %s381, %s24
      %s383 = smul.u32 %s23, 2
      %s384 = sadd.s32 %s383, %s24
      %s385 = smul.u32 16, %s384
      %p386 = scmp.lt.s32.totalorder %s385, 63
      %s387 = scalar_select %p386, %s385, 63
      %s388 = smul.addr %s387, 4
      %s389 = scalar_lea.vmem %s2, %s388
      %s390 = smul.u32 %s23, 2
      %s391 = sadd.s32 %s390, %s24
      %s392 = smul.u32 16, %s391
      %p393 = scmp.lt.s32.totalorder %s23, 1
      %s394 = scalar_select %p393, %s23, 1
      %s395 = smul.addr %s394, 16
      %s396 = smul.addr %s395, 8
      %s397 = scalar_lea.vmem %s8, %s396
      %p399 = scmp.eq.s32.totalorder %s24, 0
      // Predicated region
      $region53: #{tpu_custom_call.1} parent=51 // pred_check
        %p400 = pneg %p399
      $region54: #{tpu_custom_call.1} parent=51 // pred_check_branch
        %402 = sbr.rel (%p400) target = $region56
      $region55: #{tpu_custom_call.1} parent=51 // pred_region
        %vm403 = vcmask 64512
        %404 = vst.msk [vmem:[#allocation2] sm:$0xff] %vm403, 0.0
        %405 = vst.msk [vmem:[#allocation2 + $0x8] sm:$0xff] %vm403, 0.0
        %406 = vst.msk [vmem:[#allocation2 + $0x10] sm:$0xff] %vm403, 0.0
        %407 = vst.msk [vmem:[#allocation2 + $0x18] sm:$0xff] %vm403, 0.0
        %408 = vst.msk [vmem:[#allocation2 + $0x20] sm:$0xff] %vm403, 0.0
        %409 = vst.msk [vmem:[#allocation2 + $0x28] sm:$0xff] %vm403, 0.0
        %410 = vst.msk [vmem:[#allocation2 + $0x30] sm:$0xff] %vm403, 0.0
        %411 = vst.msk [vmem:[#allocation2 + $0x38] sm:$0xff] %vm403, 0.0
        %412 = vst.msk [vmem:[#allocation2 + $0x40] sm:$0xff] %vm403, 0.0
        %413 = vst.msk [vmem:[#allocation2 + $0x48] sm:$0xff] %vm403, 0.0
        %414 = vst.msk [vmem:[#allocation2 + $0x50] sm:$0xff] %vm403, 0.0
        %415 = vst.msk [vmem:[#allocation2 + $0x58] sm:$0xff] %vm403, 0.0
        %416 = vst.msk [vmem:[#allocation2 + $0x60] sm:$0xff] %vm403, 0.0
        %417 = vst.msk [vmem:[#allocation2 + $0x68] sm:$0xff] %vm403, 0.0
        %418 = vst.msk [vmem:[#allocation2 + $0x70] sm:$0xff] %vm403, 0.0
        %419 = vst.msk [vmem:[#allocation2 + $0x78] sm:$0xff] %vm403, 0.0
      $region56: #{tpu_custom_call.1} parent=51 // pred_fallthru
        _
      %v420 = vld [vmem:[%s372] sm:$0xff]
      %v421 = vld [vmem:[%s372 + $0x8] sm:$0xff]
      %v422 = vld [vmem:[%s372 + $0x10] sm:$0xff]
      %v423 = vld [vmem:[%s372 + $0x18] sm:$0xff]
      %v424 = vld [vmem:[%s372 + $0x20] sm:$0xff]
      %v425 = vld [vmem:[%s372 + $0x28] sm:$0xff]
      %v426 = vld [vmem:[%s372 + $0x30] sm:$0xff]
      %v427 = vld [vmem:[%s372 + $0x38] sm:$0xff]
      %v428 = vld [vmem:[%s372 + $0x40] sm:$0xff]
      %v429 = vld [vmem:[%s372 + $0x48] sm:$0xff]
      %v430 = vld [vmem:[%s372 + $0x50] sm:$0xff]
      %v431 = vld [vmem:[%s372 + $0x58] sm:$0xff]
      %v432 = vld [vmem:[%s372 + $0x60] sm:$0xff]
      %v433 = vld [vmem:[%s372 + $0x68] sm:$0xff]
      %v434 = vld [vmem:[%s372 + $0x70] sm:$0xff]
      %v435 = vld [vmem:[%s372 + $0x78] sm:$0xff]
      %v436 = vlaneseq
      %v437 = vand.u32 %v436, 127
      %v438 = vadd.s32 %v437, 128
      %439 = vset.pattern.permute.xlu0 0
      %440 = vperm.xlu0 %439, %v420
      %v441 = vpop.permute.xlu0 %440
      %442 = vset.pattern.permute.xlu0 0
      %443 = vperm.xlu0 %442, %v421
      %v444 = vpop.permute.xlu0 %443
      %445 = vset.pattern.permute.xlu0 0
      %446 = vperm.xlu0 %445, %v422
      %v447 = vpop.permute.xlu0 %446
      %448 = vset.pattern.permute.xlu0 0
      %449 = vperm.xlu0 %448, %v423
      %v450 = vpop.permute.xlu0 %449
      %451 = vset.pattern.permute.xlu0 0
      %452 = vperm.xlu0 %451, %v424
      %v453 = vpop.permute.xlu0 %452
      %454 = vset.pattern.permute.xlu0 0
      %455 = vperm.xlu0 %454, %v425
      %v456 = vpop.permute.xlu0 %455
      %457 = vset.pattern.permute.xlu0 0
      %458 = vperm.xlu0 %457, %v426
      %v459 = vpop.permute.xlu0 %458
      %460 = vset.pattern.permute.xlu0 0
      %461 = vperm.xlu0 %460, %v427
      %v462 = vpop.permute.xlu0 %461
      %463 = vset.pattern.permute.xlu0 0
      %464 = vperm.xlu0 %463, %v428
      %v465 = vpop.permute.xlu0 %464
      %466 = vset.pattern.permute.xlu0 0
      %467 = vperm.xlu0 %466, %v429
      %v468 = vpop.permute.xlu0 %467
      %469 = vset.pattern.permute.xlu0 0
      %470 = vperm.xlu0 %469, %v430
      %v471 = vpop.permute.xlu0 %470
      %472 = vset.pattern.permute.xlu0 0
      %473 = vperm.xlu0 %472, %v431
      %v474 = vpop.permute.xlu0 %473
      %475 = vset.pattern.permute.xlu0 0
      %476 = vperm.xlu0 %475, %v432
      %v477 = vpop.permute.xlu0 %476
      %478 = vset.pattern.permute.xlu0 0
      %479 = vperm.xlu0 %478, %v433
      %v480 = vpop.permute.xlu0 %479
      %481 = vset.pattern.permute.xlu0 0
      %482 = vperm.xlu0 %481, %v434
      %v483 = vpop.permute.xlu0 %482
      %484 = vset.pattern.permute.xlu0 0
      %485 = vperm.xlu0 %484, %v435
      %v486 = vpop.permute.xlu0 %485
      %vm487 = vcmp.eq.s32.totalorder %v437, %v441
      %vm488 = vcmp.eq.s32.totalorder %v438, %v441
      %vm489 = vcmp.eq.s32.totalorder %v437, %v444
      %vm490 = vcmp.eq.s32.totalorder %v438, %v444
      %vm491 = vcmp.eq.s32.totalorder %v437, %v447
      %vm492 = vcmp.eq.s32.totalorder %v438, %v447
      %vm493 = vcmp.eq.s32.totalorder %v437, %v450
      %vm494 = vcmp.eq.s32.totalorder %v438, %v450
      %vm495 = vcmp.eq.s32.totalorder %v437, %v453
      %vm496 = vcmp.eq.s32.totalorder %v438, %v453
      %vm497 = vcmp.eq.s32.totalorder %v437, %v456
      %vm498 = vcmp.eq.s32.totalorder %v438, %v456
      %vm499 = vcmp.eq.s32.totalorder %v437, %v459
      %vm500 = vcmp.eq.s32.totalorder %v438, %v459
      %vm501 = vcmp.eq.s32.totalorder %v437, %v462
      %vm502 = vcmp.eq.s32.totalorder %v438, %v462
      %vm503 = vcmp.eq.s32.totalorder %v437, %v465
      %vm504 = vcmp.eq.s32.totalorder %v438, %v465
      %vm505 = vcmp.eq.s32.totalorder %v437, %v468
      %vm506 = vcmp.eq.s32.totalorder %v438, %v468
      %vm507 = vcmp.eq.s32.totalorder %v437, %v471
      %vm508 = vcmp.eq.s32.totalorder %v438, %v471
      %vm509 = vcmp.eq.s32.totalorder %v437, %v474
      %vm510 = vcmp.eq.s32.totalorder %v438, %v474
      %vm511 = vcmp.eq.s32.totalorder %v437, %v477
      %vm512 = vcmp.eq.s32.totalorder %v438, %v477
      %vm513 = vcmp.eq.s32.totalorder %v437, %v480
      %vm514 = vcmp.eq.s32.totalorder %v438, %v480
      %vm515 = vcmp.eq.s32.totalorder %v437, %v483
      %vm516 = vcmp.eq.s32.totalorder %v438, %v483
      %vm517 = vcmp.eq.s32.totalorder %v437, %v486
      %vm518 = vcmp.eq.s32.totalorder %v438, %v486
      %v519 = vadd.s32 %v420, 128
      %v520 = vadd.s32 %v421, 128
      %v521 = vadd.s32 %v422, 128
      %v522 = vadd.s32 %v423, 128
      %v523 = vadd.s32 %v424, 128
      %v524 = vadd.s32 %v425, 128
      %v525 = vadd.s32 %v426, 128
      %v526 = vadd.s32 %v427, 128
      %v527 = vadd.s32 %v428, 128
      %v528 = vadd.s32 %v429, 128
      %v529 = vadd.s32 %v430, 128
      %v530 = vadd.s32 %v431, 128
      %v531 = vadd.s32 %v432, 128
      %v532 = vadd.s32 %v433, 128
      %v533 = vadd.s32 %v434, 128
      %v534 = vadd.s32 %v435, 128
      %535 = vset.pattern.permute.xlu0 1
      %536 = vperm.xlu0 %535, %v519
      %v537 = vpop.permute.xlu0 %536
      %538 = vset.pattern.permute.xlu0 1
      %539 = vperm.xlu0 %538, %v520
      %v540 = vpop.permute.xlu0 %539
      %541 = vset.pattern.permute.xlu0 1
      %542 = vperm.xlu0 %541, %v521
      %v543 = vpop.permute.xlu0 %542
      %544 = vset.pattern.permute.xlu0 1
      %545 = vperm.xlu0 %544, %v522
      %v546 = vpop.permute.xlu0 %545
      %547 = vset.pattern.permute.xlu0 1
      %548 = vperm.xlu0 %547, %v523
      %v549 = vpop.permute.xlu0 %548
      %550 = vset.pattern.permute.xlu0 1
      %551 = vperm.xlu0 %550, %v524
      %v552 = vpop.permute.xlu0 %551
      %553 = vset.pattern.permute.xlu0 1
      %554 = vperm.xlu0 %553, %v525
      %v555 = vpop.permute.xlu0 %554
      %556 = vset.pattern.permute.xlu0 1
      %557 = vperm.xlu0 %556, %v526
      %v558 = vpop.permute.xlu0 %557
      %559 = vset.pattern.permute.xlu0 1
      %560 = vperm.xlu0 %559, %v527
      %v561 = vpop.permute.xlu0 %560
      %562 = vset.pattern.permute.xlu0 1
      %563 = vperm.xlu0 %562, %v528
      %v564 = vpop.permute.xlu0 %563
      %565 = vset.pattern.permute.xlu0 1
      %566 = vperm.xlu0 %565, %v529
      %v567 = vpop.permute.xlu0 %566
      %568 = vset.pattern.permute.xlu0 1
      %569 = vperm.xlu0 %568, %v530
      %v570 = vpop.permute.xlu0 %569
      %571 = vset.pattern.permute.xlu0 1
      %572 = vperm.xlu0 %571, %v531
      %v573 = vpop.permute.xlu0 %572
      %574 = vset.pattern.permute.xlu0 1
      %575 = vperm.xlu0 %574, %v532
      %v576 = vpop.permute.xlu0 %575
      %577 = vset.pattern.permute.xlu0 1
      %578 = vperm.xlu0 %577, %v533
      %v579 = vpop.permute.xlu0 %578
      %580 = vset.pattern.permute.xlu0 1
      %581 = vperm.xlu0 %580, %v534
      %v582 = vpop.permute.xlu0 %581
      %vm583 = vcmp.eq.s32.totalorder %v437, %v537
      %vm584 = vcmp.eq.s32.totalorder %v438, %v537
      %vm585 = vcmp.eq.s32.totalorder %v437, %v540
      %vm586 = vcmp.eq.s32.totalorder %v438, %v540
      %vm587 = vcmp.eq.s32.totalorder %v437, %v543
      %vm588 = vcmp.eq.s32.totalorder %v438, %v543
      %vm589 = vcmp.eq.s32.totalorder %v437, %v546
      %vm590 = vcmp.eq.s32.totalorder %v438, %v546
      %vm591 = vcmp.eq.s32.totalorder %v437, %v549
      %vm592 = vcmp.eq.s32.totalorder %v438, %v549
      %vm593 = vcmp.eq.s32.totalorder %v437, %v552
      %vm594 = vcmp.eq.s32.totalorder %v438, %v552
      %vm595 = vcmp.eq.s32.totalorder %v437, %v555
      %vm596 = vcmp.eq.s32.totalorder %v438, %v555
      %vm597 = vcmp.eq.s32.totalorder %v437, %v558
      %vm598 = vcmp.eq.s32.totalorder %v438, %v558
      %vm599 = vcmp.eq.s32.totalorder %v437, %v561
      %vm600 = vcmp.eq.s32.totalorder %v438, %v561
      %vm601 = vcmp.eq.s32.totalorder %v437, %v564
      %vm602 = vcmp.eq.s32.totalorder %v438, %v564
      %vm603 = vcmp.eq.s32.totalorder %v437, %v567
      %vm604 = vcmp.eq.s32.totalorder %v438, %v567
      %vm605 = vcmp.eq.s32.totalorder %v437, %v570
      %vm606 = vcmp.eq.s32.totalorder %v438, %v570
      %vm607 = vcmp.eq.s32.totalorder %v437, %v573
      %vm608 = vcmp.eq.s32.totalorder %v438, %v573
      %vm609 = vcmp.eq.s32.totalorder %v437, %v576
      %vm610 = vcmp.eq.s32.totalorder %v438, %v576
      %vm611 = vcmp.eq.s32.totalorder %v437, %v579
      %vm612 = vcmp.eq.s32.totalorder %v438, %v579
      %vm613 = vcmp.eq.s32.totalorder %v437, %v582
      %vm614 = vcmp.eq.s32.totalorder %v438, %v582
      %vm615 = vmor %vm487, %vm583
      %vm616 = vmor %vm488, %vm584
      %vm617 = vmor %vm489, %vm585
      %vm618 = vmor %vm490, %vm586
      %vm619 = vmor %vm491, %vm587
      %vm620 = vmor %vm492, %vm588
      %vm621 = vmor %vm493, %vm589
      %vm622 = vmor %vm494, %vm590
      %vm623 = vmor %vm495, %vm591
      %vm624 = vmor %vm496, %vm592
      %vm625 = vmor %vm497, %vm593
      %vm626 = vmor %vm498, %vm594
      %vm627 = vmor %vm499, %vm595
      %vm628 = vmor %vm500, %vm596
      %vm629 = vmor %vm501, %vm597
      %vm630 = vmor %vm502, %vm598
      %vm631 = vmor %vm503, %vm599
      %vm632 = vmor %vm504, %vm600
      %vm633 = vmor %vm505, %vm601
      %vm634 = vmor %vm506, %vm602
      %vm635 = vmor %vm507, %vm603
      %vm636 = vmor %vm508, %vm604
      %vm637 = vmor %vm509, %vm605
      %vm638 = vmor %vm510, %vm606
      %vm639 = vmor %vm511, %vm607
      %vm640 = vmor %vm512, %vm608
      %vm641 = vmor %vm513, %vm609
      %vm642 = vmor %vm514, %vm610
      %vm643 = vmor %vm515, %vm611
      %vm644 = vmor %vm516, %vm612
      %vm645 = vmor %vm517, %vm613
      %vm646 = vmor %vm518, %vm614
      %v647 = vsel %vm615, 1, 0
      %v648 = vsel %vm616, 1, 0
      %v649 = vsel %vm617, 1, 0
      %v650 = vsel %vm618, 1, 0
      %v651 = vsel %vm619, 1, 0
      %v652 = vsel %vm620, 1, 0
      %v653 = vsel %vm621, 1, 0
      %v654 = vsel %vm622, 1, 0
      %v655 = vsel %vm623, 1, 0
      %v656 = vsel %vm624, 1, 0
      %v657 = vsel %vm625, 1, 0
      %v658 = vsel %vm626, 1, 0
      %v659 = vsel %vm627, 1, 0
      %v660 = vsel %vm628, 1, 0
      %v661 = vsel %vm629, 1, 0
      %v662 = vsel %vm630, 1, 0
      %v663 = vsel %vm631, 1, 0
      %v664 = vsel %vm632, 1, 0
      %v665 = vsel %vm633, 1, 0
      %v666 = vsel %vm634, 1, 0
      %v667 = vsel %vm635, 1, 0
      %v668 = vsel %vm636, 1, 0
      %v669 = vsel %vm637, 1, 0
      %v670 = vsel %vm638, 1, 0
      %v671 = vsel %vm639, 1, 0
      %v672 = vsel %vm640, 1, 0
      %v673 = vsel %vm641, 1, 0
      %v674 = vsel %vm642, 1, 0
      %v675 = vsel %vm643, 1, 0
      %v676 = vsel %vm644, 1, 0
      %v677 = vsel %vm645, 1, 0
      %v678 = vsel %vm646, 1, 0
      %v679 = vcvt.s32.f32 %v647
      %v680 = vcvt.s32.f32 %v648
      %v681 = vcvt.s32.f32 %v649
      %v682 = vcvt.s32.f32 %v650
      %v683 = vcvt.s32.f32 %v651
      %v684 = vcvt.s32.f32 %v652
      %v685 = vcvt.s32.f32 %v653
      %v686 = vcvt.s32.f32 %v654
      %v687 = vcvt.s32.f32 %v655
      %v688 = vcvt.s32.f32 %v656
      %v689 = vcvt.s32.f32 %v657
      %v690 = vcvt.s32.f32 %v658
      %v691 = vcvt.s32.f32 %v659
      %v692 = vcvt.s32.f32 %v660
      %v693 = vcvt.s32.f32 %v661
      %v694 = vcvt.s32.f32 %v662
      %v695 = vcvt.s32.f32 %v663
      %v696 = vcvt.s32.f32 %v664
      %v697 = vcvt.s32.f32 %v665
      %v698 = vcvt.s32.f32 %v666
      %v699 = vcvt.s32.f32 %v667
      %v700 = vcvt.s32.f32 %v668
      %v701 = vcvt.s32.f32 %v669
      %v702 = vcvt.s32.f32 %v670
      %v703 = vcvt.s32.f32 %v671
      %v704 = vcvt.s32.f32 %v672
      %v705 = vcvt.s32.f32 %v673
      %v706 = vcvt.s32.f32 %v674
      %v707 = vcvt.s32.f32 %v675
      %v708 = vcvt.s32.f32 %v676
      %v709 = vcvt.s32.f32 %v677
      %v710 = vcvt.s32.f32 %v678
      %v711 = vpack.c.bf16 %v681, %v679
      %v712 = vpack.c.bf16 %v682, %v680
      %v713 = vpack.c.bf16 %v685, %v683
      %v714 = vpack.c.bf16 %v686, %v684
      %v715 = vpack.c.bf16 %v689, %v687
      %v716 = vpack.c.bf16 %v690, %v688
      %v717 = vpack.c.bf16 %v693, %v691
      %v718 = vpack.c.bf16 %v694, %v692
      %v719 = vpack.c.bf16 %v697, %v695
      %v720 = vpack.c.bf16 %v698, %v696
      %v721 = vpack.c.bf16 %v701, %v699
      %v722 = vpack.c.bf16 %v702, %v700
      %v723 = vpack.c.bf16 %v705, %v703
      %v724 = vpack.c.bf16 %v706, %v704
      %v725 = vpack.c.bf16 %v709, %v707
      %v726 = vpack.c.bf16 %v710, %v708
      %v727 = vld [vmem:[%s3] sm:$0xf]
      %v728 = vld [vmem:[%s3 + $0x4] sm:$0xf]
      %v729 = vld [vmem:[%s3 + $0x8] sm:$0xf]
      %v730 = vld [vmem:[%s3 + $0xc] sm:$0xf]
      %v731 = vld [vmem:[%s3 + $0x10] sm:$0xf]
      %v732 = vld [vmem:[%s3 + $0x14] sm:$0xf]
      %v733 = vld [vmem:[%s3 + $0x18] sm:$0xf]
      %v734 = vld [vmem:[%s3 + $0x1c] sm:$0xf]
      %v735 = vld [vmem:[%s3 + $0x20] sm:$0xf]
      %v736 = vld [vmem:[%s3 + $0x24] sm:$0xf]
      %v737 = vld [vmem:[%s3 + $0x28] sm:$0xf]
      %v738 = vld [vmem:[%s3 + $0x2c] sm:$0xf]
      %v739 = vld [vmem:[%s3 + $0x30] sm:$0xf]
      %v740 = vld [vmem:[%s3 + $0x34] sm:$0xf]
      %v741 = vld [vmem:[%s3 + $0x38] sm:$0xf]
      %v742 = vld [vmem:[%s3 + $0x3c] sm:$0xf]
      %v743 = vld [vmem:[%s3 + $0x40] sm:$0xf]
      %v744 = vld [vmem:[%s3 + $0x44] sm:$0xf]
      %v745 = vld [vmem:[%s3 + $0x48] sm:$0xf]
      %v746 = vld [vmem:[%s3 + $0x4c] sm:$0xf]
      %v747 = vld [vmem:[%s3 + $0x50] sm:$0xf]
      %v748 = vld [vmem:[%s3 + $0x54] sm:$0xf]
      %v749 = vld [vmem:[%s3 + $0x58] sm:$0xf]
      %v750 = vld [vmem:[%s3 + $0x5c] sm:$0xf]
      %v751 = vld [vmem:[%s3 + $0x60] sm:$0xf]
      %v752 = vld [vmem:[%s3 + $0x64] sm:$0xf]
      %v753 = vld [vmem:[%s3 + $0x68] sm:$0xf]
      %v754 = vld [vmem:[%s3 + $0x6c] sm:$0xf]
      %v755 = vld [vmem:[%s3 + $0x70] sm:$0xf]
      %v756 = vld [vmem:[%s3 + $0x74] sm:$0xf]
      %v757 = vld [vmem:[%s3 + $0x78] sm:$0xf]
      %v758 = vld [vmem:[%s3 + $0x7c] sm:$0xf]
      %v759 = vld [vmem:[%s389] sm:$0xf]
      %v760 = vld [vmem:[%s389 + $0x4] sm:$0xf]
      %v761 = vld [vmem:[%s389 + $0x8] sm:$0xf]
      %v762 = vld [vmem:[%s389 + $0xc] sm:$0xf]
      %v763 = vld [vmem:[%s389 + $0x10] sm:$0xf]
      %v764 = vld [vmem:[%s389 + $0x14] sm:$0xf]
      %v765 = vld [vmem:[%s389 + $0x18] sm:$0xf]
      %v766 = vld [vmem:[%s389 + $0x1c] sm:$0xf]
      %v767 = vld [vmem:[%s389 + $0x20] sm:$0xf]
      %v768 = vld [vmem:[%s389 + $0x24] sm:$0xf]
      %v769 = vld [vmem:[%s389 + $0x28] sm:$0xf]
      %v770 = vld [vmem:[%s389 + $0x2c] sm:$0xf]
      %v771 = vld [vmem:[%s389 + $0x30] sm:$0xf]
      %v772 = vld [vmem:[%s389 + $0x34] sm:$0xf]
      %v773 = vld [vmem:[%s389 + $0x38] sm:$0xf]
      %v774 = vld [vmem:[%s389 + $0x3c] sm:$0xf]
      %v775 = vld [vmem:[%s4] sm:$0x1]
      %v792 = vunpack.c.l.b16 %v759
      %v793 = vunpack.c.l.b16 %v760
      %v794 = vunpack.c.l.b16 %v761
      %v795 = vunpack.c.l.b16 %v762
      %v796 = vunpack.c.l.b16 %v763
      %v797 = vunpack.c.l.b16 %v764
      %v798 = vunpack.c.l.b16 %v765
      %v799 = vunpack.c.l.b16 %v766
      %v800 = vunpack.c.l.b16 %v767
      %v801 = vunpack.c.l.b16 %v768
      %v802 = vunpack.c.l.b16 %v769
      %v803 = vunpack.c.l.b16 %v770
      %v804 = vunpack.c.l.b16 %v771
      %v805 = vunpack.c.l.b16 %v772
      %v806 = vunpack.c.l.b16 %v773
      %v807 = vunpack.c.l.b16 %v774
      %v808 = vpack.c.b16 %v793, %v792
      %v809 = vpack.c.b16 %v795, %v794
      %v810 = vpack.c.b16 %v797, %v796
      %v811 = vpack.c.b16 %v799, %v798
      %v812 = vpack.c.b16 %v801, %v800
      %v813 = vpack.c.b16 %v803, %v802
      %v814 = vpack.c.b16 %v805, %v804
      %v815 = vpack.c.b16 %v807, %v806
      %vm816 = vcmask 7168
      %v818 = vsel %vm816, %v808, 0
      %v821 = vsel %vm816, %v809, 0
      %v824 = vsel %vm816, %v810, 0
      %v827 = vsel %vm816, %v811, 0
      %v830 = vsel %vm816, %v812, 0
      %v833 = vsel %vm816, %v813, 0
      %v836 = vsel %vm816, %v814, 0
      %v839 = vsel %vm816, %v815, 0
      %vm841 = vcmask 1040384
      %v842 = vsel 0, 4294967295, 65535
      %v843 = vsel %vm841, %v842, 0
      %v845 = vand.u32 %v775, %v843
      %847 = vmatprep.subr.bf16.mxu0 0
      %848 = vmatpush1.bf16.msra.mxu0 %v845
      %849 = vmatprep.subr.bf16.mxu0 0
      %850 = vmatpush1.bf16.msra.mxu0 0
      %851 = vmatprep.subr.bf16.mxu0 0
      %852 = vmatpush1.bf16.msra.mxu0 0
      %853 = vmatprep.subr.bf16.mxu0 0
      %854 = vmatpush1.bf16.msra.mxu0 0
      %855 = vmatprep.subr.bf16.mxu0 0
      %856 = vmatpush1.bf16.msra.mxu0 0
      %857 = vmatprep.subr.bf16.mxu0 0
      %858 = vmatpush1.bf16.msra.mxu0 0
      %859 = vmatprep.subr.bf16.mxu0 0
      %860 = vmatpush1.bf16.msra.mxu0 0
      %861 = vmatprep.subr.bf16.mxu0 0
      %862 = vmatpush1.bf16.msra.mxu0 0
      %863 = vmatprep.subr.bf16.mxu0 0
      %864 = vmatpush1.bf16.msra.mxu0 0
      %865 = vmatprep.subr.bf16.mxu0 0
      %866 = vmatpush1.bf16.msra.mxu0 0
      %867 = vmatprep.subr.bf16.mxu0 0
      %868 = vmatpush1.bf16.msra.mxu0 0
      %869 = vmatprep.subr.bf16.mxu0 0
      %870 = vmatpush1.bf16.msra.mxu0 0
      %871 = vmatprep.subr.bf16.mxu0 0
      %872 = vmatpush1.bf16.msra.mxu0 0
      %873 = vmatprep.subr.bf16.mxu0 0
      %874 = vmatpush1.bf16.msra.mxu0 0
      %875 = vmatprep.subr.bf16.mxu0 0
      %876 = vmatpush1.bf16.msra.mxu0 0
      %877 = vmatprep.subr.bf16.mxu0 0
      %878 = vmatpush1.bf16.msra.mxu0 0
      %879 = vmatprep.mubr.bf16.mxu0 0
      %880 = vmatmul.mubr.bf16.gmra.mrb[0].mxu0 %v818
      %v881 = vpop.f32.mrb[0].mxu0
      %v882 = vadd.f32 0.0, %v881
      %v883 = vpop.f32.mrb[0].mxu0
      %v884 = vpop.f32.mrb[0].mxu0
      %v885 = vadd.f32 0.0, %v884
      %v886 = vpop.f32.mrb[0].mxu0
      %887 = vmatprep.mubr.bf16.mxu0 0
      %888 = vmatmul.mubr.bf16.gmra.mrb[0].mxu0 %v821
      %v889 = vpop.f32.mrb[0].mxu0
      %v890 = vadd.f32 0.0, %v889
      %v891 = vpop.f32.mrb[0].mxu0
      %v892 = vpop.f32.mrb[0].mxu0
      %v893 = vadd.f32 0.0, %v892
      %v894 = vpop.f32.mrb[0].mxu0
      %895 = vmatprep.mubr.bf16.mxu0 0
      %896 = vmatmul.mubr.bf16.gmra.mrb[0].mxu0 %v824
      %v897 = vpop.f32.mrb[0].mxu0
      %v898 = vadd.f32 0.0, %v897
      %v899 = vpop.f32.mrb[0].mxu0
      %v900 = vpop.f32.mrb[0].mxu0
      %v901 = vadd.f32 0.0, %v900
      %v902 = vpop.f32.mrb[0].mxu0
      %903 = vmatprep.mubr.bf16.mxu0 0
      %904 = vmatmul.mubr.bf16.gmra.mrb[0].mxu0 %v827
      %v905 = vpop.f32.mrb[0].mxu0
      %v906 = vadd.f32 0.0, %v905
      %v907 = vpop.f32.mrb[0].mxu0
      %v908 = vpop.f32.mrb[0].mxu0
      %v909 = vadd.f32 0.0, %v908
      %v910 = vpop.f32.mrb[0].mxu0
      %911 = vmatprep.mubr.bf16.mxu0 0
      %912 = vmatmul.mubr.bf16.gmra.mrb[0].mxu0 %v830
      %v913 = vpop.f32.mrb[0].mxu0
      %v914 = vadd.f32 0.0, %v913
      %v915 = vpop.f32.mrb[0].mxu0
      %v916 = vpop.f32.mrb[0].mxu0
      %v917 = vadd.f32 0.0, %v916
      %v918 = vpop.f32.mrb[0].mxu0
      %919 = vmatprep.mubr.bf16.mxu0 0
      %920 = vmatmul.mubr.bf16.gmra.mrb[0].mxu0 %v833
      %v921 = vpop.f32.mrb[0].mxu0
      %v922 = vadd.f32 0.0, %v921
      %v923 = vpop.f32.mrb[0].mxu0
      %v924 = vpop.f32.mrb[0].mxu0
      %v925 = vadd.f32 0.0, %v924
      %v926 = vpop.f32.mrb[0].mxu0
      %927 = vmatprep.mubr.bf16.mxu0 0
      %928 = vmatmul.mubr.bf16.gmra.mrb[0].mxu0 %v836
      %v929 = vpop.f32.mrb[0].mxu0
      %v930 = vadd.f32 0.0, %v929
      %v931 = vpop.f32.mrb[0].mxu0
      %v932 = vpop.f32.mrb[0].mxu0
      %v933 = vadd.f32 0.0, %v932
      %v934 = vpop.f32.mrb[0].mxu0
      %935 = vmatprep.mubr.bf16.mxu0 0
      %936 = vmatmul.mubr.bf16.gmra.mrb[0].mxu0 %v839
      %v937 = vpop.f32.mrb[0].mxu0
      %v938 = vadd.f32 0.0, %v937
      %v939 = vpop.f32.mrb[0].mxu0
      %v940 = vpop.f32.mrb[0].mxu0
      %v941 = vadd.f32 0.0, %v940
      %v942 = vpop.f32.mrb[0].mxu0
      %943 = vdwg.mxu0
      %v976 = vunpack.c.l.b16 %v727
      %v977 = vunpack.c.l.b16 %v728
      %v978 = vunpack.c.l.b16 %v729
      %v979 = vunpack.c.l.b16 %v730
      %v980 = vunpack.c.l.b16 %v731
      %v981 = vunpack.c.l.b16 %v732
      %v982 = vunpack.c.l.b16 %v733
      %v983 = vunpack.c.l.b16 %v734
      %v984 = vunpack.c.l.b16 %v735
      %v985 = vunpack.c.l.b16 %v736
      %v986 = vunpack.c.l.b16 %v737
      %v987 = vunpack.c.l.b16 %v738
      %v988 = vunpack.c.l.b16 %v739
      %v989 = vunpack.c.l.b16 %v740
      %v990 = vunpack.c.l.b16 %v741
      %v991 = vunpack.c.l.b16 %v742
      %v992 = vunpack.c.l.b16 %v743
      %v993 = vunpack.c.l.b16 %v744
      %v994 = vunpack.c.l.b16 %v745
      %v995 = vunpack.c.l.b16 %v746
      %v996 = vunpack.c.l.b16 %v747
      %v997 = vunpack.c.l.b16 %v748
      %v998 = vunpack.c.l.b16 %v749
      %v999 = vunpack.c.l.b16 %v750
      %v1000 = vunpack.c.l.b16 %v751
      %v1001 = vunpack.c.l.b16 %v752
      %v1002 = vunpack.c.l.b16 %v753
      %v1003 = vunpack.c.l.b16 %v754
      %v1004 = vunpack.c.l.b16 %v755
      %v1005 = vunpack.c.l.b16 %v756
      %v1006 = vunpack.c.l.b16 %v757
      %v1007 = vunpack.c.l.b16 %v758
      %v1008 = vpack.c.b16 %v977, %v976
      %v1009 = vpack.c.b16 %v979, %v978
      %v1010 = vpack.c.b16 %v981, %v980
      %v1011 = vpack.c.b16 %v983, %v982
      %v1012 = vpack.c.b16 %v985, %v984
      %v1013 = vpack.c.b16 %v987, %v986
      %v1014 = vpack.c.b16 %v989, %v988
      %v1015 = vpack.c.b16 %v991, %v990
      %v1016 = vpack.c.b16 %v993, %v992
      %v1017 = vpack.c.b16 %v995, %v994
      %v1018 = vpack.c.b16 %v997, %v996
      %v1019 = vpack.c.b16 %v999, %v998
      %v1020 = vpack.c.b16 %v1001, %v1000
      %v1021 = vpack.c.b16 %v1003, %v1002
      %v1022 = vpack.c.b16 %v1005, %v1004
      %v1023 = vpack.c.b16 %v1007, %v1006
      %1040 = vmatprep.subr.bf16.mxu0 0
      %1041 = vmatpush1.bf16.msra.mxu0 %v1008
      %1042 = vmatprep.subr.bf16.mxu0 0
      %1043 = vmatpush1.bf16.msra.mxu0 %v1009
      %1044 = vmatprep.subr.bf16.mxu0 0
      %1045 = vmatpush1.bf16.msra.mxu0 %v1010
      %1046 = vmatprep.subr.bf16.mxu0 0
      %1047 = vmatpush1.bf16.msra.mxu0 %v1011
      %1048 = vmatprep.subr.bf16.mxu0 0
      %1049 = vmatpush1.bf16.msra.mxu0 %v1012
      %1050 = vmatprep.subr.bf16.mxu0 0
      %1051 = vmatpush1.bf16.msra.mxu0 %v1013
      %1052 = vmatprep.subr.bf16.mxu0 0
      %1053 = vmatpush1.bf16.msra.mxu0 %v1014
      %1054 = vmatprep.subr.bf16.mxu0 0
      %1055 = vmatpush1.bf16.msra.mxu0 %v1015
      %1056 = vmatprep.subr.bf16.mxu0 0
      %1057 = vmatpush1.bf16.msra.mxu0 %v1016
      %1058 = vmatprep.subr.bf16.mxu0 0
      %1059 = vmatpush1.bf16.msra.mxu0 %v1017
      %1060 = vmatprep.subr.bf16.mxu0 0
      %1061 = vmatpush1.bf16.msra.mxu0 %v1018
      %1062 = vmatprep.subr.bf16.mxu0 0
      %1063 = vmatpush1.bf16.msra.mxu0 %v1019
      %1064 = vmatprep.subr.bf16.mxu0 0
      %1065 = vmatpush1.bf16.msra.mxu0 %v1020
      %1066 = vmatprep.subr.bf16.mxu0 0
      %1067 = vmatpush1.bf16.msra.mxu0 %v1021
      %1068 = vmatprep.subr.bf16.mxu0 0
      %1069 = vmatpush1.bf16.msra.mxu0 %v1022
      %1070 = vmatprep.subr.bf16.mxu0 0
      %1071 = vmatpush1.bf16.msra.mxu0 %v1023
      %1072 = vmatprep.mubr.bf16.mxu0 %v712
      %1073 = vmatmul.mubr.bf16.gmra.mrb[0].mxu0 %v711
      %v1074 = vpop.f32.mrb[0].mxu0
      %v1075 = vadd.f32 %v882, %v1074
      %v1076 = vpop.f32.mrb[0].mxu0
      %v1077 = vpop.f32.mrb[0].mxu0
      %v1078 = vadd.f32 %v885, %v1077
      %v1079 = vpop.f32.mrb[0].mxu0
      %1080 = vmatprep.mubr.bf16.mxu0 %v714
      %1081 = vmatmul.mubr.bf16.gmra.mrb[0].mxu0 %v713
      %v1082 = vpop.f32.mrb[0].mxu0
      %v1083 = vadd.f32 %v890, %v1082
      %v1084 = vpop.f32.mrb[0].mxu0
      %v1085 = vpop.f32.mrb[0].mxu0
      %v1086 = vadd.f32 %v893, %v1085
      %v1087 = vpop.f32.mrb[0].mxu0
      %1088 = vmatprep.mubr.bf16.mxu0 %v716
      %1089 = vmatmul.mubr.bf16.gmra.mrb[0].mxu0 %v715
      %v1090 = vpop.f32.mrb[0].mxu0
      %v1091 = vadd.f32 %v898, %v1090
      %v1092 = vpop.f32.mrb[0].mxu0
      %v1093 = vpop.f32.mrb[0].mxu0
      %v1094 = vadd.f32 %v901, %v1093
      %v1095 = vpop.f32.mrb[0].mxu0
      %1096 = vmatprep.mubr.bf16.mxu0 %v718
      %1097 = vmatmul.mubr.bf16.gmra.mrb[0].mxu0 %v717
      %v1098 = vpop.f32.mrb[0].mxu0
      %v1099 = vadd.f32 %v906, %v1098
      %v1100 = vpop.f32.mrb[0].mxu0
      %v1101 = vpop.f32.mrb[0].mxu0
      %v1102 = vadd.f32 %v909, %v1101
      %v1103 = vpop.f32.mrb[0].mxu0
      %1104 = vmatprep.mubr.bf16.mxu0 %v720
      %1105 = vmatmul.mubr.bf16.gmra.mrb[0].mxu0 %v719
      %v1106 = vpop.f32.mrb[0].mxu0
      %v1107 = vadd.f32 %v914, %v1106
      %v1108 = vpop.f32.mrb[0].mxu0
      %v1109 = vpop.f32.mrb[0].mxu0
      %v1110 = vadd.f32 %v917, %v1109
      %v1111 = vpop.f32.mrb[0].mxu0
      %1112 = vmatprep.mubr.bf16.mxu0 %v722
      %1113 = vmatmul.mubr.bf16.gmra.mrb[0].mxu0 %v721
      %v1114 = vpop.f32.mrb[0].mxu0
      %v1115 = vadd.f32 %v922, %v1114
      %v1116 = vpop.f32.mrb[0].mxu0
      %v1117 = vpop.f32.mrb[0].mxu0
      %v1118 = vadd.f32 %v925, %v1117
      %v1119 = vpop.f32.mrb[0].mxu0
      %1120 = vmatprep.mubr.bf16.mxu0 %v724
      %1121 = vmatmul.mubr.bf16.gmra.mrb[0].mxu0 %v723
      %v1122 = vpop.f32.mrb[0].mxu0
      %v1123 = vadd.f32 %v930, %v1122
      %v1124 = vpop.f32.mrb[0].mxu0
      %v1125 = vpop.f32.mrb[0].mxu0
      %v1126 = vadd.f32 %v933, %v1125
      %v1127 = vpop.f32.mrb[0].mxu0
      %1128 = vmatprep.mubr.bf16.mxu0 %v726
      %1129 = vmatmul.mubr.bf16.gmra.mrb[0].mxu0 %v725
      %v1130 = vpop.f32.mrb[0].mxu0
      %v1131 = vadd.f32 %v938, %v1130
      %v1132 = vpop.f32.mrb[0].mxu0
      %v1133 = vpop.f32.mrb[0].mxu0
      %v1134 = vadd.f32 %v941, %v1133
      %v1135 = vpop.f32.mrb[0].mxu0
      %1136 = vdwg.mxu0
      %v1137 = vld [vmem:[%s5] sm:$0x1]
      %v1139 = vlaneseq
      %v1140 = vshrl.u32 %v1139, 7
      %v1141 = vsub.s32 0, %v1140
      %v1142 = vrot.slane %v1137, %v1141
      %v1144 = vadd.f32 %v1075, %v1142
      %v1145 = vadd.f32 %v1078, %v1142
      %v1146 = vadd.f32 %v1083, %v1142
      %v1147 = vadd.f32 %v1086, %v1142
      %v1148 = vadd.f32 %v1091, %v1142
      %v1149 = vadd.f32 %v1094, %v1142
      %v1150 = vadd.f32 %v1099, %v1142
      %v1151 = vadd.f32 %v1102, %v1142
      %v1152 = vadd.f32 %v1107, %v1142
      %v1153 = vadd.f32 %v1110, %v1142
      %v1154 = vadd.f32 %v1115, %v1142
      %v1155 = vadd.f32 %v1118, %v1142
      %v1156 = vadd.f32 %v1123, %v1142
      %v1157 = vadd.f32 %v1126, %v1142
      %v1158 = vadd.f32 %v1131, %v1142
      %v1159 = vadd.f32 %v1134, %v1142
      %v1160 = vmax.f32 %v1144, 0.0
      %v1161 = vmax.f32 %v1145, 0.0
      %v1162 = vmax.f32 %v1146, 0.0
      %v1163 = vmax.f32 %v1147, 0.0
      %v1164 = vmax.f32 %v1148, 0.0
      %v1165 = vmax.f32 %v1149, 0.0
      %v1166 = vmax.f32 %v1150, 0.0
      %v1167 = vmax.f32 %v1151, 0.0
      %v1168 = vmax.f32 %v1152, 0.0
      %v1169 = vmax.f32 %v1153, 0.0
      %v1170 = vmax.f32 %v1154, 0.0
      %v1171 = vmax.f32 %v1155, 0.0
      %v1172 = vmax.f32 %v1156, 0.0
      %v1173 = vmax.f32 %v1157, 0.0
      %v1174 = vmax.f32 %v1158, 0.0
      %v1175 = vmax.f32 %v1159, 0.0
      %v1176 = vld [vmem:[%s6] sm:$0xff]
      %v1177 = vld [vmem:[%s6 + $0x8] sm:$0xff]
      %v1178 = vld [vmem:[%s6 + $0x10] sm:$0xff]
      %v1179 = vld [vmem:[%s6 + $0x18] sm:$0xff]
      %v1180 = vld [vmem:[%s7] sm:$0x1]
      %v1182 = vlaneseq
      %v1183 = vshrl.u32 %v1182, 7
      %v1184 = vsub.s32 0, %v1183
      %v1185 = vrot.slane %v1180, %v1184
      %vm1187 = vcmask 261120
      %v1189 = vsel %vm1187, %v1160, 0
      %v1192 = vsel %vm1187, %v1161, 0
      %v1195 = vsel %vm1187, %v1162, 0
      %v1198 = vsel %vm1187, %v1163, 0
      %v1201 = vsel %vm1187, %v1164, 0
      %v1204 = vsel %vm1187, %v1165, 0
      %v1207 = vsel %vm1187, %v1166, 0
      %v1210 = vsel %vm1187, %v1167, 0
      %v1213 = vsel %vm1187, %v1168, 0
      %v1216 = vsel %vm1187, %v1169, 0
      %v1219 = vsel %vm1187, %v1170, 0
      %v1222 = vsel %vm1187, %v1171, 0
      %v1225 = vsel %vm1187, %v1172, 0
      %v1228 = vsel %vm1187, %v1173, 0
      %v1231 = vsel %vm1187, %v1174, 0
      %v1234 = vsel %vm1187, %v1175, 0
      %1236 = vmatprep.subr.mxu0 0.0
      %1237 = vmatpush1.msra.mxu0 %v1176
      %1238 = vmatprep.subr.mxu0 0.0
      %1239 = vmatpush1.msra.mxu0 %v1177
      %1240 = vmatprep.subr.mxu0 0.0
      %1241 = vmatpush1.msra.mxu0 %v1178
      %1242 = vmatprep.subr.mxu0 0.0
      %1243 = vmatpush1.msra.mxu0 %v1179
      %1244 = vmatprep.subr.mxu0 0.0
      %1245 = vmatpush1.msra.mxu0 0.0
      %1246 = vmatprep.subr.mxu0 0.0
      %1247 = vmatpush1.msra.mxu0 0.0
      %1248 = vmatprep.subr.mxu0 0.0
      %1249 = vmatpush1.msra.mxu0 0.0
      %1250 = vmatprep.subr.mxu0 0.0
      %1251 = vmatpush1.msra.mxu0 0.0
      %1252 = vmatprep.subr.mxu0 0.0
      %1253 = vmatpush1.msra.mxu0 0.0
      %1254 = vmatprep.subr.mxu0 0.0
      %1255 = vmatpush1.msra.mxu0 0.0
      %1256 = vmatprep.subr.mxu0 0.0
      %1257 = vmatpush1.msra.mxu0 0.0
      %1258 = vmatprep.subr.mxu0 0.0
      %1259 = vmatpush1.msra.mxu0 0.0
      %1260 = vmatprep.subr.mxu0 0.0
      %1261 = vmatpush1.msra.mxu0 0.0
      %1262 = vmatprep.subr.mxu0 0.0
      %1263 = vmatpush1.msra.mxu0 0.0
      %1264 = vmatprep.subr.mxu0 0.0
      %1265 = vmatpush1.msra.mxu0 0.0
      %1266 = vmatprep.subr.mxu0 0.0
      %1267 = vmatpush1.msra.mxu0 0.0
      %1268 = vmatprep.subr.mxu0 0.0
      %1269 = vmatpush1.msra.mxu0 0.0
      %1270 = vmatprep.subr.mxu0 0.0
      %1271 = vmatpush1.msra.mxu0 0.0
      %1272 = vmatprep.subr.mxu0 0.0
      %1273 = vmatpush1.msra.mxu0 0.0
      %1274 = vmatprep.subr.mxu0 0.0
      %1275 = vmatpush1.msra.mxu0 0.0
      %1276 = vmatprep.subr.mxu0 0.0
      %1277 = vmatpush1.msra.mxu0 0.0
      %1278 = vmatprep.subr.mxu0 0.0
      %1279 = vmatpush1.msra.mxu0 0.0
      %1280 = vmatprep.subr.mxu0 0.0
      %1281 = vmatpush1.msra.mxu0 0.0
      %1282 = vmatprep.subr.mxu0 0.0
      %1283 = vmatpush1.msra.mxu0 0.0
      %1284 = vmatprep.subr.mxu0 0.0
      %1285 = vmatpush1.msra.mxu0 0.0
      %1286 = vmatprep.subr.mxu0 0.0
      %1287 = vmatpush1.msra.mxu0 0.0
      %1288 = vmatprep.subr.mxu0 0.0
      %1289 = vmatpush1.msra.mxu0 0.0
      %1290 = vmatprep.subr.mxu0 0.0
      %1291 = vmatpush1.msra.mxu0 0.0
      %1292 = vmatprep.subr.mxu0 0.0
      %1293 = vmatpush1.msra.mxu0 0.0
      %1294 = vmatprep.subr.mxu0 0.0
      %1295 = vmatpush1.msra.mxu0 0.0
      %1296 = vmatprep.subr.mxu0 0.0
      %1297 = vmatpush1.msra.mxu0 0.0
      %1298 = vmatprep.subr.mxu0 0.0
      %1299 = vmatpush1.msra.mxu0 0.0
      %1300 = vmatprep.mubr.f32.mxu0 0.0
      %1301 = vmatmul.mubr.f32.gmra.mrb[0].mxu0 %v1189
      %v1302 = vpop.f32.mrb[0].mxu0
      %v1303 = vadd.f32 %v1185, %v1302
      %v1304 = vpop.f32.mrb[0].mxu0
      %1305 = vmatprep.mubr.f32.mxu0 0.0
      %1306 = vmatmul.mubr.f32.gmra.mrb[0].mxu0 %v1192
      %v1307 = vpop.f32.mrb[0].mxu0
      %v1308 = vadd.f32 %v1185, %v1307
      %v1309 = vpop.f32.mrb[0].mxu0
      %1310 = vmatprep.mubr.f32.mxu0 0.0
      %1311 = vmatmul.mubr.f32.gmra.mrb[0].mxu0 %v1195
      %v1312 = vpop.f32.mrb[0].mxu0
      %v1313 = vadd.f32 %v1185, %v1312
      %v1314 = vpop.f32.mrb[0].mxu0
      %1315 = vmatprep.mubr.f32.mxu0 0.0
      %1316 = vmatmul.mubr.f32.gmra.mrb[0].mxu0 %v1198
      %v1317 = vpop.f32.mrb[0].mxu0
      %v1318 = vadd.f32 %v1185, %v1317
      %v1319 = vpop.f32.mrb[0].mxu0
      %1320 = vmatprep.mubr.f32.mxu0 0.0
      %1321 = vmatmul.mubr.f32.gmra.mrb[0].mxu0 %v1201
      %v1322 = vpop.f32.mrb[0].mxu0
      %v1323 = vadd.f32 %v1185, %v1322
      %v1324 = vpop.f32.mrb[0].mxu0
      %1325 = vmatprep.mubr.f32.mxu0 0.0
      %1326 = vmatmul.mubr.f32.gmra.mrb[0].mxu0 %v1204
      %v1327 = vpop.f32.mrb[0].mxu0
      %v1328 = vadd.f32 %v1185, %v1327
      %v1329 = vpop.f32.mrb[0].mxu0
      %1330 = vmatprep.mubr.f32.mxu0 0.0
      %1331 = vmatmul.mubr.f32.gmra.mrb[0].mxu0 %v1207
      %v1332 = vpop.f32.mrb[0].mxu0
      %v1333 = vadd.f32 %v1185, %v1332
      %v1334 = vpop.f32.mrb[0].mxu0
      %1335 = vmatprep.mubr.f32.mxu0 0.0
      %1336 = vmatmul.mubr.f32.gmra.mrb[0].mxu0 %v1210
      %v1337 = vpop.f32.mrb[0].mxu0
      %v1338 = vadd.f32 %v1185, %v1337
      %v1339 = vpop.f32.mrb[0].mxu0
      %1340 = vmatprep.mubr.f32.mxu0 0.0
      %1341 = vmatmul.mubr.f32.gmra.mrb[0].mxu0 %v1213
      %v1342 = vpop.f32.mrb[0].mxu0
      %v1343 = vadd.f32 %v1185, %v1342
      %v1344 = vpop.f32.mrb[0].mxu0
      %1345 = vmatprep.mubr.f32.mxu0 0.0
      %1346 = vmatmul.mubr.f32.gmra.mrb[0].mxu0 %v1216
      %v1347 = vpop.f32.mrb[0].mxu0
      %v1348 = vadd.f32 %v1185, %v1347
      %v1349 = vpop.f32.mrb[0].mxu0
      %1350 = vmatprep.mubr.f32.mxu0 0.0
      %1351 = vmatmul.mubr.f32.gmra.mrb[0].mxu0 %v1219
      %v1352 = vpop.f32.mrb[0].mxu0
      %v1353 = vadd.f32 %v1185, %v1352
      %v1354 = vpop.f32.mrb[0].mxu0
      %1355 = vmatprep.mubr.f32.mxu0 0.0
      %1356 = vmatmul.mubr.f32.gmra.mrb[0].mxu0 %v1222
      %v1357 = vpop.f32.mrb[0].mxu0
      %v1358 = vadd.f32 %v1185, %v1357
      %v1359 = vpop.f32.mrb[0].mxu0
      %1360 = vmatprep.mubr.f32.mxu0 0.0
      %1361 = vmatmul.mubr.f32.gmra.mrb[0].mxu0 %v1225
      %v1362 = vpop.f32.mrb[0].mxu0
      %v1363 = vadd.f32 %v1185, %v1362
      %v1364 = vpop.f32.mrb[0].mxu0
      %1365 = vmatprep.mubr.f32.mxu0 0.0
      %1366 = vmatmul.mubr.f32.gmra.mrb[0].mxu0 %v1228
      %v1367 = vpop.f32.mrb[0].mxu0
      %v1368 = vadd.f32 %v1185, %v1367
      %v1369 = vpop.f32.mrb[0].mxu0
      %1370 = vmatprep.mubr.f32.mxu0 0.0
      %1371 = vmatmul.mubr.f32.gmra.mrb[0].mxu0 %v1231
      %v1372 = vpop.f32.mrb[0].mxu0
      %v1373 = vadd.f32 %v1185, %v1372
      %v1374 = vpop.f32.mrb[0].mxu0
      %1375 = vmatprep.mubr.f32.mxu0 0.0
      %1376 = vmatmul.mubr.f32.gmra.mrb[0].mxu0 %v1234
      %v1377 = vpop.f32.mrb[0].mxu0
      %v1378 = vadd.f32 %v1185, %v1377
      %v1379 = vpop.f32.mrb[0].mxu0
      %1380 = vdwg.mxu0
      %v1381 = vpack.c.bf16 %v1308, %v1303
      %v1382 = vpack.c.bf16 %v1318, %v1313
      %v1383 = vpack.c.bf16 %v1328, %v1323
      %v1384 = vpack.c.bf16 %v1338, %v1333
      %v1385 = vpack.c.bf16 %v1348, %v1343
      %v1386 = vpack.c.bf16 %v1358, %v1353
      %v1387 = vpack.c.bf16 %v1368, %v1363
      %v1388 = vpack.c.bf16 %v1378, %v1373
      %v1389 = vlaneseq
      %v1390 = vshrl.u32 %v1389, 7
      %v1391 = vadd.s32 %v1390, 8
      %v1392 = vadd.s32 %v1390, 16
      %v1393 = vadd.s32 %v1390, 24
      %v1394 = vadd.s32 %v1390, 32
      %v1395 = vadd.s32 %v1390, 40
      %v1396 = vadd.s32 %v1390, 48
      %v1397 = vadd.s32 %v1390, 56
      %v1398 = vadd.s32 %v1390, 64
      %v1399 = vadd.s32 %v1390, 72
      %v1400 = vadd.s32 %v1390, 80
      %v1401 = vadd.s32 %v1390, 88
      %v1402 = vadd.s32 %v1390, 96
      %v1403 = vadd.s32 %v1390, 104
      %v1404 = vadd.s32 %v1390, 112
      %v1405 = vadd.s32 %v1390, 120
      %v1406 = vld [vmem:[%s380] sm:$0x1]
      %v1407 = vlaneseq
      %v1408 = vshrl.u32 %v1407, 7
      %v1409 = vsub.s32 0, %v1408
      %v1410 = vrot.slane %v1406, %v1409
      %vm1411 = vcmp.eq.s32.totalorder %v1390, %v1410
      %vm1412 = vcmp.eq.s32.totalorder %v1391, %v1410
      %vm1413 = vcmp.eq.s32.totalorder %v1392, %v1410
      %vm1414 = vcmp.eq.s32.totalorder %v1393, %v1410
      %vm1415 = vcmp.eq.s32.totalorder %v1394, %v1410
      %vm1416 = vcmp.eq.s32.totalorder %v1395, %v1410
      %vm1417 = vcmp.eq.s32.totalorder %v1396, %v1410
      %vm1418 = vcmp.eq.s32.totalorder %v1397, %v1410
      %vm1419 = vcmp.eq.s32.totalorder %v1398, %v1410
      %vm1420 = vcmp.eq.s32.totalorder %v1399, %v1410
      %vm1421 = vcmp.eq.s32.totalorder %v1400, %v1410
      %vm1422 = vcmp.eq.s32.totalorder %v1401, %v1410
      %vm1423 = vcmp.eq.s32.totalorder %v1402, %v1410
      %vm1424 = vcmp.eq.s32.totalorder %v1403, %v1410
      %vm1425 = vcmp.eq.s32.totalorder %v1404, %v1410
      %vm1426 = vcmp.eq.s32.totalorder %v1405, %v1410
      %v1427 = vsel %vm1411, 1, 0
      %v1428 = vsel %vm1412, 1, 0
      %v1429 = vsel %vm1413, 1, 0
      %v1430 = vsel %vm1414, 1, 0
      %v1431 = vsel %vm1415, 1, 0
      %v1432 = vsel %vm1416, 1, 0
      %v1433 = vsel %vm1417, 1, 0
      %v1434 = vsel %vm1418, 1, 0
      %v1435 = vsel %vm1419, 1, 0
      %v1436 = vsel %vm1420, 1, 0
      %v1437 = vsel %vm1421, 1, 0
      %v1438 = vsel %vm1422, 1, 0
      %v1439 = vsel %vm1423, 1, 0
      %v1440 = vsel %vm1424, 1, 0
      %v1441 = vsel %vm1425, 1, 0
      %v1442 = vsel %vm1426, 1, 0
      %v1443 = vcvt.s32.f32 %v1427
      %v1444 = vcvt.s32.f32 %v1428
      %v1445 = vcvt.s32.f32 %v1429
      %v1446 = vcvt.s32.f32 %v1430
      %v1447 = vcvt.s32.f32 %v1431
      %v1448 = vcvt.s32.f32 %v1432
      %v1449 = vcvt.s32.f32 %v1433
      %v1450 = vcvt.s32.f32 %v1434
      %v1451 = vcvt.s32.f32 %v1435
      %v1452 = vcvt.s32.f32 %v1436
      %v1453 = vcvt.s32.f32 %v1437
      %v1454 = vcvt.s32.f32 %v1438
      %v1455 = vcvt.s32.f32 %v1439
      %v1456 = vcvt.s32.f32 %v1440
      %v1457 = vcvt.s32.f32 %v1441
      %v1458 = vcvt.s32.f32 %v1442
      %v1459 = vpack.c.bf16 %v1444, %v1443
      %v1460 = vpack.c.bf16 %v1446, %v1445
      %v1461 = vpack.c.bf16 %v1448, %v1447
      %v1462 = vpack.c.bf16 %v1450, %v1449
      %v1463 = vpack.c.bf16 %v1452, %v1451
      %v1464 = vpack.c.bf16 %v1454, %v1453
      %v1465 = vpack.c.bf16 %v1456, %v1455
      %v1466 = vpack.c.bf16 %v1458, %v1457
      %v1467 = vld [vmem:[#allocation2] sm:$0xff]
      %v1468 = vld [vmem:[#allocation2 + $0x8] sm:$0xff]
      %v1469 = vld [vmem:[#allocation2 + $0x10] sm:$0xff]
      %v1470 = vld [vmem:[#allocation2 + $0x18] sm:$0xff]
      %v1471 = vld [vmem:[#allocation2 + $0x20] sm:$0xff]
      %v1472 = vld [vmem:[#allocation2 + $0x28] sm:$0xff]
      %v1473 = vld [vmem:[#allocation2 + $0x30] sm:$0xff]
      %v1474 = vld [vmem:[#allocation2 + $0x38] sm:$0xff]
      %v1475 = vld [vmem:[#allocation2 + $0x40] sm:$0xff]
      %v1476 = vld [vmem:[#allocation2 + $0x48] sm:$0xff]
      %v1477 = vld [vmem:[#allocation2 + $0x50] sm:$0xff]
      %v1478 = vld [vmem:[#allocation2 + $0x58] sm:$0xff]
      %v1479 = vld [vmem:[#allocation2 + $0x60] sm:$0xff]
      %v1480 = vld [vmem:[#allocation2 + $0x68] sm:$0xff]
      %v1481 = vld [vmem:[#allocation2 + $0x70] sm:$0xff]
      %v1482 = vld [vmem:[#allocation2 + $0x78] sm:$0xff]
      %1483 = vmatprep.subr.bf16.mxu0 0
      %1484 = vmatpush1.bf16.msra.mxu0 %v1381
      %1485 = vmatprep.subr.bf16.mxu0 0
      %1486 = vmatpush1.bf16.msra.mxu0 %v1382
      %1487 = vmatprep.subr.bf16.mxu0 0
      %1488 = vmatpush1.bf16.msra.mxu0 %v1383
      %1489 = vmatprep.subr.bf16.mxu0 0
      %1490 = vmatpush1.bf16.msra.mxu0 %v1384
      %1491 = vmatprep.subr.bf16.mxu0 0
      %1492 = vmatpush1.bf16.msra.mxu0 %v1385
      %1493 = vmatprep.subr.bf16.mxu0 0
      %1494 = vmatpush1.bf16.msra.mxu0 %v1386
      %1495 = vmatprep.subr.bf16.mxu0 0
      %1496 = vmatpush1.bf16.msra.mxu0 %v1387
      %1497 = vmatprep.subr.bf16.mxu0 0
      %1498 = vmatpush1.bf16.msra.mxu0 %v1388
      %1499 = vmatprep.subr.bf16.mxu0 0
      %1500 = vmatpush1.bf16.msra.mxu0 0
      %1501 = vmatprep.subr.bf16.mxu0 0
      %1502 = vmatpush1.bf16.msra.mxu0 0
      %1503 = vmatprep.subr.bf16.mxu0 0
      %1504 = vmatpush1.bf16.msra.mxu0 0
      %1505 = vmatprep.subr.bf16.mxu0 0
      %1506 = vmatpush1.bf16.msra.mxu0 0
      %1507 = vmatprep.subr.bf16.mxu0 0
      %1508 = vmatpush1.bf16.msra.mxu0 0
      %1509 = vmatprep.subr.bf16.mxu0 0
      %1510 = vmatpush1.bf16.msra.mxu0 0
      %1511 = vmatprep.subr.bf16.mxu0 0
      %1512 = vmatpush1.bf16.msra.mxu0 0
      %1513 = vmatprep.subr.bf16.mxu0 0
      %1514 = vmatpush1.bf16.msra.mxu0 0
      %1515 = vmatprep.mubr.bf16.mxu0 0
      %1516 = vmatmul.mubr.bf16.gmra.mrb[0].mxu0 %v1459
      %v1517 = vpop.f32.mrb[0].mxu0
      %v1518 = vadd.f32 0.0, %v1517
      %v1519 = vpop.f32.mrb[0].mxu0
      %v1520 = vpop.f32.mrb[0].mxu0
      %v1521 = vadd.f32 0.0, %v1520
      %v1522 = vpop.f32.mrb[0].mxu0
      %1523 = vmatprep.mubr.bf16.mxu0 0
      %1524 = vmatmul.mubr.bf16.gmra.mrb[0].mxu0 %v1460
      %v1525 = vpop.f32.mrb[0].mxu0
      %v1526 = vadd.f32 0.0, %v1525
      %v1527 = vpop.f32.mrb[0].mxu0
      %v1528 = vpop.f32.mrb[0].mxu0
      %v1529 = vadd.f32 0.0, %v1528
      %v1530 = vpop.f32.mrb[0].mxu0
      %1531 = vmatprep.mubr.bf16.mxu0 0
      %1532 = vmatmul.mubr.bf16.gmra.mrb[0].mxu0 %v1461
      %v1533 = vpop.f32.mrb[0].mxu0
      %v1534 = vadd.f32 0.0, %v1533
      %v1535 = vpop.f32.mrb[0].mxu0
      %v1536 = vpop.f32.mrb[0].mxu0
      %v1537 = vadd.f32 0.0, %v1536
      %v1538 = vpop.f32.mrb[0].mxu0
      %1539 = vmatprep.mubr.bf16.mxu0 0
      %1540 = vmatmul.mubr.bf16.gmra.mrb[0].mxu0 %v1462
      %v1541 = vpop.f32.mrb[0].mxu0
      %v1542 = vadd.f32 0.0, %v1541
      %v1543 = vpop.f32.mrb[0].mxu0
      %v1544 = vpop.f32.mrb[0].mxu0
      %v1545 = vadd.f32 0.0, %v1544
      %v1546 = vpop.f32.mrb[0].mxu0
      %1547 = vmatprep.mubr.bf16.mxu0 0
      %1548 = vmatmul.mubr.bf16.gmra.mrb[0].mxu0 %v1463
      %v1549 = vpop.f32.mrb[0].mxu0
      %v1550 = vadd.f32 0.0, %v1549
      %v1551 = vpop.f32.mrb[0].mxu0
      %v1552 = vpop.f32.mrb[0].mxu0
      %v1553 = vadd.f32 0.0, %v1552
      %v1554 = vpop.f32.mrb[0].mxu0
      %1555 = vmatprep.mubr.bf16.mxu0 0
      %1556 = vmatmul.mubr.bf16.gmra.mrb[0].mxu0 %v1464
      %v1557 = vpop.f32.mrb[0].mxu0
      %v1558 = vadd.f32 0.0, %v1557
      %v1559 = vpop.f32.mrb[0].mxu0
      %v1560 = vpop.f32.mrb[0].mxu0
      %v1561 = vadd.f32 0.0, %v1560
      %v1562 = vpop.f32.mrb[0].mxu0
      %1563 = vmatprep.mubr.bf16.mxu0 0
      %1564 = vmatmul.mubr.bf16.gmra.mrb[0].mxu0 %v1465
      %v1565 = vpop.f32.mrb[0].mxu0
      %v1566 = vadd.f32 0.0, %v1565
      %v1567 = vpop.f32.mrb[0].mxu0
      %v1568 = vpop.f32.mrb[0].mxu0
      %v1569 = vadd.f32 0.0, %v1568
      %v1570 = vpop.f32.mrb[0].mxu0
      %1571 = vmatprep.mubr.bf16.mxu0 0
      %1572 = vmatmul.mubr.bf16.gmra.mrb[0].mxu0 %v1466
      %v1573 = vpop.f32.mrb[0].mxu0
      %v1574 = vadd.f32 0.0, %v1573
      %v1575 = vpop.f32.mrb[0].mxu0
      %v1576 = vpop.f32.mrb[0].mxu0
      %v1577 = vadd.f32 0.0, %v1576
      %v1578 = vpop.f32.mrb[0].mxu0
      %1579 = vdwg.mxu0
      %v1580 = vadd.f32 %v1467, %v1518
      %v1581 = vadd.f32 %v1468, %v1521
      %v1582 = vadd.f32 %v1469, %v1526
      %v1583 = vadd.f32 %v1470, %v1529
      %v1584 = vadd.f32 %v1471, %v1534
      %v1585 = vadd.f32 %v1472, %v1537
      %v1586 = vadd.f32 %v1473, %v1542
      %v1587 = vadd.f32 %v1474, %v1545
      %v1588 = vadd.f32 %v1475, %v1550
      %v1589 = vadd.f32 %v1476, %v1553
      %v1590 = vadd.f32 %v1477, %v1558
      %v1591 = vadd.f32 %v1478, %v1561
      %v1592 = vadd.f32 %v1479, %v1566
      %v1593 = vadd.f32 %v1480, %v1569
      %v1594 = vadd.f32 %v1481, %v1574
      %v1595 = vadd.f32 %v1482, %v1577
      %vm1596 = vcmask 64512
      %1597 = vst.msk [vmem:[#allocation2] sm:$0xff] %vm1596, %v1580
      %1598 = vst.msk [vmem:[#allocation2 + $0x8] sm:$0xff] %vm1596, %v1581
      %1599 = vst.msk [vmem:[#allocation2 + $0x10] sm:$0xff] %vm1596, %v1582
      %1600 = vst.msk [vmem:[#allocation2 + $0x18] sm:$0xff] %vm1596, %v1583
      %1601 = vst.msk [vmem:[#allocation2 + $0x20] sm:$0xff] %vm1596, %v1584
      %1602 = vst.msk [vmem:[#allocation2 + $0x28] sm:$0xff] %vm1596, %v1585
      %1603 = vst.msk [vmem:[#allocation2 + $0x30] sm:$0xff] %vm1596, %v1586
      %1604 = vst.msk [vmem:[#allocation2 + $0x38] sm:$0xff] %vm1596, %v1587
      %1605 = vst.msk [vmem:[#allocation2 + $0x40] sm:$0xff] %vm1596, %v1588
      %1606 = vst.msk [vmem:[#allocation2 + $0x48] sm:$0xff] %vm1596, %v1589
      %1607 = vst.msk [vmem:[#allocation2 + $0x50] sm:$0xff] %vm1596, %v1590
      %1608 = vst.msk [vmem:[#allocation2 + $0x58] sm:$0xff] %vm1596, %v1591
      %1609 = vst.msk [vmem:[#allocation2 + $0x60] sm:$0xff] %vm1596, %v1592
      %1610 = vst.msk [vmem:[#allocation2 + $0x68] sm:$0xff] %vm1596, %v1593
      %1611 = vst.msk [vmem:[#allocation2 + $0x70] sm:$0xff] %vm1596, %v1594
      %1612 = vst.msk [vmem:[#allocation2 + $0x78] sm:$0xff] %vm1596, %v1595
      %p1613 = scmp.eq.s32.totalorder %s24, 1
      // Predicated region
      $region57: #{tpu_custom_call.1} parent=51 // pred_check
        %p1614 = pneg %p1613
      $region58: #{tpu_custom_call.1} parent=51 // pred_check_branch
        %1616 = sbr.rel (%p1614) target = $region60
      $region59: #{tpu_custom_call.1} parent=51 // pred_region
        %v1617 = vld [vmem:[#allocation2] sm:$0xff]
        %v1618 = vld [vmem:[#allocation2 + $0x8] sm:$0xff]
        %v1619 = vld [vmem:[#allocation2 + $0x10] sm:$0xff]
        %v1620 = vld [vmem:[#allocation2 + $0x18] sm:$0xff]
        %v1621 = vld [vmem:[#allocation2 + $0x20] sm:$0xff]
        %v1622 = vld [vmem:[#allocation2 + $0x28] sm:$0xff]
        %v1623 = vld [vmem:[#allocation2 + $0x30] sm:$0xff]
        %v1624 = vld [vmem:[#allocation2 + $0x38] sm:$0xff]
        %v1625 = vld [vmem:[#allocation2 + $0x40] sm:$0xff]
        %v1626 = vld [vmem:[#allocation2 + $0x48] sm:$0xff]
        %v1627 = vld [vmem:[#allocation2 + $0x50] sm:$0xff]
        %v1628 = vld [vmem:[#allocation2 + $0x58] sm:$0xff]
        %v1629 = vld [vmem:[#allocation2 + $0x60] sm:$0xff]
        %v1630 = vld [vmem:[#allocation2 + $0x68] sm:$0xff]
        %v1631 = vld [vmem:[#allocation2 + $0x70] sm:$0xff]
        %v1632 = vld [vmem:[#allocation2 + $0x78] sm:$0xff]
        %1633 = vst.msk [vmem:[%s397] sm:$0xff] %vm1596, %v1617
        %1634 = vst.msk [vmem:[%s397 + $0x8] sm:$0xff] %vm1596, %v1618
        %1635 = vst.msk [vmem:[%s397 + $0x10] sm:$0xff] %vm1596, %v1619
        %1636 = vst.msk [vmem:[%s397 + $0x18] sm:$0xff] %vm1596, %v1620
        %1637 = vst.msk [vmem:[%s397 + $0x20] sm:$0xff] %vm1596, %v1621
        %1638 = vst.msk [vmem:[%s397 + $0x28] sm:$0xff] %vm1596, %v1622
        %1639 = vst.msk [vmem:[%s397 + $0x30] sm:$0xff] %vm1596, %v1623
        %1640 = vst.msk [vmem:[%s397 + $0x38] sm:$0xff] %vm1596, %v1624
        %1641 = vst.msk [vmem:[%s397 + $0x40] sm:$0xff] %vm1596, %v1625
        %1642 = vst.msk [vmem:[%s397 + $0x48] sm:$0xff] %vm1596, %v1626
        %1643 = vst.msk [vmem:[%s397 + $0x50] sm:$0xff] %vm1596, %v1627
        %1644 = vst.msk [vmem:[%s397 + $0x58] sm:$0xff] %vm1596, %v1628
        %1645 = vst.msk [vmem:[%s397 + $0x60] sm:$0xff] %vm1596, %v1629
        %1646 = vst.msk [vmem:[%s397 + $0x68] sm:$0xff] %vm1596, %v1630
        %1647 = vst.msk [vmem:[%s397 + $0x70] sm:$0xff] %vm1596, %v1631
        %1648 = vst.msk [vmem:[%s397 + $0x78] sm:$0xff] %vm1596, %v1632
      $region60: #{tpu_custom_call.1} parent=51 // pred_fallthru
        _
      %p1649 = scmp.lt.s32.totalorder %s23, 1
      %s1650 = scalar_select %p1649, %s23, 1
      %s1651 = smul.addr %s1650, 16
      %s1652 = smul.addr %s1651, 8
      %s1653 = scalar_lea.vmem %s8, %s1652
      // Predicated region
      $region61: #{tpu_custom_call.1} parent=51 // pred_check
        %p1654 = pneg %p244
      $region62: #{tpu_custom_call.1} parent=51 // pred_check_branch
        %1656 = sbr.rel (%p1654) target = $region64
      $region63: #{tpu_custom_call.1} parent=51 // pred_region
        _
      $region64: #{tpu_custom_call.1} parent=51 // pred_fallthru
        _
    $region52: #{tpu_custom_call.1} parent=5 // pred_fallthru
      _
    %p1657 = scmp.le.s32.totalorder 2, %s14
    // Predicated region
    $region65: #{tpu_custom_call.1} parent=5 // pred_check
      %p1658 = pneg %p1657
    $region66: #{tpu_custom_call.1} parent=5 // pred_check_branch
      %1660 = sbr.rel (%p1658) target = $region68
    $region67: #{tpu_custom_call.1} parent=5 // pred_region
      %s1661 = ssub.s32 %s14, 2
      // Predicated region
      $region69: #{tpu_custom_call.1} parent=67 // pred_check
        %p1662 = pneg %p250
      $region70: #{tpu_custom_call.1} parent=67 // pred_check_branch
        %1664 = sbr.rel (%p1662) target = $region72
      $region71: #{tpu_custom_call.1} parent=67 // pred_region
        %p1665 = scmp.lt.s32.totalorder %s25, 1
        %s1666 = scalar_select %p1665, %s25, 1
        %s1667 = smul.addr %s1666, 16
        %s1668 = smul.addr %s1667, 8
        %s1669 = scalar_lea.vmem %s8, %s1668
      $region72: #{tpu_custom_call.1} parent=67 // pred_fallthru
        _
    $region68: #{tpu_custom_call.1} parent=5 // pred_fallthru
      _
  $region6: #{tpu_custom_call.1} parent=0 // loop_footer
    %s18 = sadd.s32 1, %s14
  $region7: #{tpu_custom_call.1} parent=0 // loop_footer_branch
    %13 = sbr.rel target = $region3
  $region8: #{tpu_custom_call.1} parent=0 // loop_exit
    _

</llo_original>
